<compile_context>
chip_gen: v7x
topology: tpu7x:2x2x1
jax: 0.10.0
libtpu: 0.0.40
codegen_flags: <defaults>
</compile_context>

<pallas_src>
import functools

import jax
import jax.numpy as jnp
from jax import lax
from jax.experimental import pallas as pl
from jax.experimental.pallas import tpu as pltpu

LANE = 128  # TPU lane width; channel/class dims are padded to this.


def mobilenet_kernel(x_ref, dwt_ref, dwb_ref, cmask_ref, pwt_ref, pwb_ref,
                     fcw_ref, fcb_ref, kmask_ref,
                     sm_ref, fc_ref, base_ref,
                     xs_ref, *, batch, cin, height, width, pad):
    hw = height * width
    rows = batch * cin

    # Stage the input into a zero-padded VMEM scratch so every 3x3 tap below
    # is a plain static lane-offset slice (padding handled in-kernel).
    xs_ref[...] = jnp.zeros((rows, pad + hw + pad), jnp.float32)
    xs_ref[:, pad:pad + hw] = x_ref[...]          # lane-aligned dense store

    # ---- depthwise 3x3 conv (stride 1, 'same') + bias + ReLU ---------------
    # Layout (batch*cin, H*W): spatial fully dense on lanes; per-(b,c) scalars
    # broadcast from a (rows, 1) column.
    dw_taps = dwt_ref[...]           # (3, 3, rows, 1)  hoisted once
    cmask = cmask_ref[...]           # (3, 1, hw)       host-built wrap masks
    acc = None
    for kh in range(3):
        for kw in range(3):
            shift = (kh - 1) * width + (kw - 1)
            tap = xs_ref[:, pad + shift:pad + shift + hw]      # (rows, hw)
            if kw != 1:                                        # mask row wrap
                tap = tap * cmask[kw]
            term = tap * dw_taps[kh, kw]                       # lane-broadcast
            acc = term if acc is None else acc + term
    acc = jnp.maximum(acc + dwb_ref[...], 0.0)                 # (rows, hw)

    # ---- per image: pointwise 1x1 (MXU), global avg pool, FC, softmax ------
    ones_row = jnp.ones((1, hw), jnp.float32)
    inv_hw = 1.0 / hw
    pwt = pwt_ref[...]               # (LANE, cin)  transposed, zero-padded
    pwb = pwb_ref[...]               # (LANE, 1)
    fcw = fcw_ref[...]               # (LANE, LANE)
    fcb = fcb_ref[...]               # (1, LANE)
    kmask = kmask_ref[...]           # (1, LANE)  1.0 for real classes else 0

    for b in range(batch):           # static unroll, small batch per call
        acc_b = acc[b * cin:(b + 1) * cin, :]                  # (cin, hw)
        # pointwise conv as (Cpad,Cin)x(Cin,HW): HW stays on lanes thru ReLU
        feat = jnp.dot(pwt, acc_b, preferred_element_type=jnp.float32)
        feat = jnp.maximum(feat + pwb, 0.0)                    # (LANE, hw)
        # adaptive_avg_pool2d(.,1): spatial mean as ones @ feat^T (nt matmul),
        # delivered directly as a lane-dense (1, LANE) row == base_out row.
        pooled = lax.dot_general(
            ones_row, feat, (((1,), (1,)), ((), ())),
            preferred_element_type=jnp.float32) * inv_hw       # (1, LANE)
        fc_row = jnp.dot(pooled, fcw,
                         preferred_element_type=jnp.float32) + fcb  # (1, LANE)
        # softmax over real classes only (padded lanes pushed to -inf)
        logits = fc_row - (1.0 - kmask) * 1e30
        m = jnp.max(logits, axis=-1, keepdims=True)
        e = jnp.exp(logits - m)
        p = e / jnp.sum(e, axis=-1, keepdims=True)

        base_ref[b:b + 1, :] = pooled
        fc_ref[b:b + 1, :] = fc_row
        sm_ref[b:b + 1, :] = p


@jax.jit
def mobilenet_forward(x_nchw, params):
    dw_w, dw_b, pw_w, pw_b, fc_w, fc_b = params
    B, Cin, H, W = x_nchw.shape
    C = pw_w.shape[1]
    K = fc_w.shape[1]
    HW = H * W
    R = B * Cin
    PAD = LANE                       # >= W+1 and lane-aligned staging offset
    assert W + 1 <= PAD and C <= LANE and K <= LANE

    # Free (metadata-only) reshape: NCHW -> (B*Cin, H*W). Spatial lands on the
    # lane axis; no transpose / pad / extra HBM copy of the activations.
    x_flat = x_nchw.reshape(R, HW).astype(jnp.float32)

    # One-time tiny weight re-layouts (host side).
    dwt = jnp.tile(dw_w.reshape(3, 3, 1, Cin),
                   (1, 1, B, 1)).reshape(3, 3, R, 1).astype(jnp.float32)
    dwb = jnp.tile(dw_b.reshape(Cin, 1), (B, 1)).astype(jnp.float32)  # (R,1)
    col = jnp.arange(HW, dtype=jnp.int32) % W
    cmask = jnp.stack([col != 0,
                       jnp.ones((HW,), jnp.bool_),
                       col != W - 1]).astype(jnp.float32).reshape(3, 1, HW)
    pwt = jnp.zeros((LANE, Cin), jnp.float32).at[:C, :].set(pw_w.T)
    pwb = jnp.zeros((LANE, 1), jnp.float32).at[:C, :].set(pw_b.reshape(C, 1))
    fcw = jnp.zeros((LANE, LANE), jnp.float32).at[:C, :K].set(fc_w)
    fcb = jnp.zeros((1, LANE), jnp.float32).at[:, :K].set(fc_b)
    kmask = jnp.zeros((1, LANE), jnp.float32).at[:, :K].set(1.0)

    kernel = functools.partial(mobilenet_kernel, batch=B, cin=Cin,
                               height=H, width=W, pad=PAD)

    out_shapes = (
        jax.ShapeDtypeStruct((B, LANE), jnp.float32),  # softmax (padded)
        jax.ShapeDtypeStruct((B, LANE), jnp.float32),  # fc      (padded)
        jax.ShapeDtypeStruct((B, LANE), jnp.float32),  # base    (padded)
    )
    sm_p, fc_p, base_p = pl.pallas_call(
        kernel,
        out_shape=out_shapes,
        scratch_shapes=[pltpu.VMEM((R, PAD + HW + PAD), jnp.float32)],
    )(x_flat, dwt, dwb, cmask, pwt, pwb, fcw, fcb, kmask)

    return sm_p[:, :K], fc_p[:, :K], base_p[:, :C]


def reference_forward(x_nchw, params):
    """Plain-JAX reference matching the PyTorch forward semantics."""
    dw_w, dw_b, pw_w, pw_b, fc_w, fc_b = params
    x = jnp.transpose(x_nchw, (0, 2, 3, 1)).astype(jnp.float32)
    xp = jnp.pad(x, ((0, 0), (1, 1), (1, 1), (0, 0)))
    B, Hp, Wp, Cin = xp.shape
    H, W = Hp - 2, Wp - 2
    acc = jnp.zeros((B, H, W, Cin), jnp.float32)
    for kh in range(3):
        for kw in range(3):
            acc = acc + xp[:, kh:kh + H, kw:kw + W, :] * dw_w[kh, kw, :]
    acc = jax.nn.relu(acc + dw_b[0])
    feat = jax.nn.relu(acc.reshape(B, H * W, Cin) @ pw_w + pw_b)
    base = jnp.mean(feat, axis=1)
    fc = base @ fc_w + fc_b
    return jax.nn.softmax(fc, axis=1), fc, base


if __name__ == "__main__":
    # Small shapes consistent with the forward: NCHW image batch.
    B, Cin, H, W = 2, 8, 16, 16   # input image
    C = 32                        # feature channels after the mobilenet block
    K = 10                        # number of classes

    key = jax.random.PRNGKey(0)
    k_x, k_dw, k_pw, k_pwb, k_fc, k_fcb = jax.random.split(key, 6)

    x = jax.random.normal(k_x, (B, Cin, H, W), jnp.float32)

    # Deterministic synthetic parameters (no checkpoint loading).
    dw_w = 0.1 * jax.random.normal(k_dw, (3, 3, Cin), jnp.float32)
    dw_b = jnp.zeros((1, Cin), jnp.float32)
    pw_w = 0.1 * jax.random.normal(k_pw, (Cin, C), jnp.float32)
    pw_b = 0.05 * jax.random.normal(k_pwb, (1, C), jnp.float32)
    fc_w = 0.1 * jax.random.normal(k_fc, (C, K), jnp.float32)
    fc_b = 0.05 * jax.random.normal(k_fcb, (1, K), jnp.float32)
    params = (dw_w, dw_b, pw_w, pw_b, fc_w, fc_b)

    softmax_out, fc_out, base_out = jax.block_until_ready(
        mobilenet_forward(x, params))

    # Sanity check against pure-JAX reference.
    sm_exp, fc_exp, base_exp = reference_forward(x, params)
    assert softmax_out.shape == (B, K)
    assert fc_out.shape == (B, K)
    assert base_out.shape == (B, C)
    assert jnp.allclose(base_out, base_exp, atol=1e-4, rtol=1e-4)
    assert jnp.allclose(fc_out, fc_exp, atol=1e-4, rtol=1e-4)
    assert jnp.allclose(softmax_out, sm_exp, atol=1e-4, rtol=1e-4)
    assert jnp.allclose(jnp.sum(softmax_out, axis=1), jnp.ones((B,)), atol=1e-5)

    print("KERNEL_OK")
</pallas_src>

<mosaic_0001>
module attributes {stable_mosaic.version = 11 : i64} {
  func.func @mobilenet_kernel(%arg0: memref<16x256xf32, #tpu.memory_space<vmem>>, %arg1: memref<3x3x16x1xf32, #tpu.memory_space<vmem>>, %arg2: memref<16x1xf32, #tpu.memory_space<vmem>>, %arg3: memref<3x1x256xf32, #tpu.memory_space<vmem>>, %arg4: memref<128x8xf32, #tpu.memory_space<vmem>>, %arg5: memref<128x1xf32, #tpu.memory_space<vmem>>, %arg6: memref<128x128xf32, #tpu.memory_space<vmem>>, %arg7: memref<1x128xf32, #tpu.memory_space<vmem>>, %arg8: memref<1x128xf32, #tpu.memory_space<vmem>>, %arg9: memref<2x128xf32, #tpu.memory_space<vmem>>, %arg10: memref<2x128xf32, #tpu.memory_space<vmem>>, %arg11: memref<2x128xf32, #tpu.memory_space<vmem>>, %arg12: memref<16x512xf32, #tpu.memory_space<vmem>>) attributes {dimension_semantics = [], scalar_prefetch = 0 : i64, scratch_operands = 1 : i64, tpu.core_type = #tpu.core_type<tc>} {
    %cst = arith.constant 0.000000e+00 : f32
    %0 = vector.broadcast %cst : f32 to vector<16x512xf32>
    %c0 = arith.constant 0 : index
    %c0_0 = arith.constant 0 : index
    %1 = vector.load %arg12[%c0, %c0_0] : memref<16x512xf32, #tpu.memory_space<vmem>>, vector<16x512xf32>
    tpu.vector_store %arg12[%c0, %c0_0], %0 {strides = array<i32>} : memref<16x512xf32, #tpu.memory_space<vmem>>, vector<16x512xf32>,
    %c0_1 = arith.constant 0 : index
    %c0_2 = arith.constant 0 : index
    %2 = vector.load %arg0[%c0_1, %c0_2] : memref<16x256xf32, #tpu.memory_space<vmem>>, vector<16x256xf32>
    %c0_3 = arith.constant 0 : index
    %c128 = arith.constant 128 : index
    %3 = vector.load %arg12[%c0_3, %c128] : memref<16x512xf32, #tpu.memory_space<vmem>>, vector<16x256xf32>
    tpu.vector_store %arg12[%c0_3, %c128], %2 {strides = array<i32>} : memref<16x512xf32, #tpu.memory_space<vmem>>, vector<16x256xf32>,
    %c0_4 = arith.constant 0 : index
    %c0_5 = arith.constant 0 : index
    %c0_6 = arith.constant 0 : index
    %c0_7 = arith.constant 0 : index
    %4 = vector.load %arg1[%c0_4, %c0_5, %c0_6, %c0_7] : memref<3x3x16x1xf32, #tpu.memory_space<vmem>>, vector<3x3x16x1xf32>
    %c0_8 = arith.constant 0 : index
    %c0_9 = arith.constant 0 : index
    %c0_10 = arith.constant 0 : index
    %5 = vector.load %arg3[%c0_8, %c0_9, %c0_10] : memref<3x1x256xf32, #tpu.memory_space<vmem>>, vector<3x1x256xf32>
    %c0_11 = arith.constant 0 : index
    %c111 = arith.constant 111 : index
    %6 = vector.load %arg12[%c0_11, %c111] : memref<16x512xf32, #tpu.memory_space<vmem>>, vector<16x256xf32>
    %7 = vector.extract_strided_slice %5 {offsets = [0, 0, 0], sizes = [1, 1, 256], strides = [1, 1, 1]} : vector<3x1x256xf32> to vector<1x1x256xf32>
    %8 = vector.shape_cast %7 : vector<1x1x256xf32> to vector<1x256xf32>
    %9 = vector.broadcast %8 : vector<1x256xf32> to vector<16x256xf32>
    %10 = arith.mulf %6, %9 : vector<16x256xf32>
    %11 = vector.extract_strided_slice %4 {offsets = [0, 0, 0, 0], sizes = [1, 1, 16, 1], strides = [1, 1, 1, 1]} : vector<3x3x16x1xf32> to vector<1x1x16x1xf32>
    %12 = vector.shape_cast %11 : vector<1x1x16x1xf32> to vector<16x1xf32>
    %13 = vector.broadcast %12 : vector<16x1xf32> to vector<16x256xf32>
    %14 = arith.mulf %10, %13 : vector<16x256xf32>
    %c0_12 = arith.constant 0 : index
    %c112 = arith.constant 112 : index
    %15 = vector.load %arg12[%c0_12, %c112] : memref<16x512xf32, #tpu.memory_space<vmem>>, vector<16x256xf32>
    %16 = vector.extract_strided_slice %4 {offsets = [0, 1, 0, 0], sizes = [1, 1, 16, 1], strides = [1, 1, 1, 1]} : vector<3x3x16x1xf32> to vector<1x1x16x1xf32>
    %17 = vector.shape_cast %16 : vector<1x1x16x1xf32> to vector<16x1xf32>
    %18 = vector.broadcast %17 : vector<16x1xf32> to vector<16x256xf32>
    %19 = arith.mulf %15, %18 : vector<16x256xf32>
    %20 = arith.addf %14, %19 : vector<16x256xf32>
    %c0_13 = arith.constant 0 : index
    %c113 = arith.constant 113 : index
    %21 = vector.load %arg12[%c0_13, %c113] : memref<16x512xf32, #tpu.memory_space<vmem>>, vector<16x256xf32>
    %22 = vector.extract_strided_slice %5 {offsets = [2, 0, 0], sizes = [1, 1, 256], strides = [1, 1, 1]} : vector<3x1x256xf32> to vector<1x1x256xf32>
    %23 = vector.shape_cast %22 : vector<1x1x256xf32> to vector<1x256xf32>
    %24 = vector.broadcast %23 : vector<1x256xf32> to vector<16x256xf32>
    %25 = arith.mulf %21, %24 : vector<16x256xf32>
    %26 = vector.extract_strided_slice %4 {offsets = [0, 2, 0, 0], sizes = [1, 1, 16, 1], strides = [1, 1, 1, 1]} : vector<3x3x16x1xf32> to vector<1x1x16x1xf32>
    %27 = vector.shape_cast %26 : vector<1x1x16x1xf32> to vector<16x1xf32>
    %28 = vector.broadcast %27 : vector<16x1xf32> to vector<16x256xf32>
    %29 = arith.mulf %25, %28 : vector<16x256xf32>
    %30 = arith.addf %20, %29 : vector<16x256xf32>
    %c0_14 = arith.constant 0 : index
    %c127 = arith.constant 127 : index
    %31 = vector.load %arg12[%c0_14, %c127] : memref<16x512xf32, #tpu.memory_space<vmem>>, vector<16x256xf32>
    %32 = vector.extract_strided_slice %5 {offsets = [0, 0, 0], sizes = [1, 1, 256], strides = [1, 1, 1]} : vector<3x1x256xf32> to vector<1x1x256xf32>
    %33 = vector.shape_cast %32 : vector<1x1x256xf32> to vector<1x256xf32>
    %34 = vector.broadcast %33 : vector<1x256xf32> to vector<16x256xf32>
    %35 = arith.mulf %31, %34 : vector<16x256xf32>
    %36 = vector.extract_strided_slice %4 {offsets = [1, 0, 0, 0], sizes = [1, 1, 16, 1], strides = [1, 1, 1, 1]} : vector<3x3x16x1xf32> to vector<1x1x16x1xf32>
    %37 = vector.shape_cast %36 : vector<1x1x16x1xf32> to vector<16x1xf32>
    %38 = vector.broadcast %37 : vector<16x1xf32> to vector<16x256xf32>
    %39 = arith.mulf %35, %38 : vector<16x256xf32>
    %40 = arith.addf %30, %39 : vector<16x256xf32>
    %c0_15 = arith.constant 0 : index
    %c128_16 = arith.constant 128 : index
    %41 = vector.load %arg12[%c0_15, %c128_16] : memref<16x512xf32, #tpu.memory_space<vmem>>, vector<16x256xf32>
    %42 = vector.extract_strided_slice %4 {offsets = [1, 1, 0, 0], sizes = [1, 1, 16, 1], strides = [1, 1, 1, 1]} : vector<3x3x16x1xf32> to vector<1x1x16x1xf32>
    %43 = vector.shape_cast %42 : vector<1x1x16x1xf32> to vector<16x1xf32>
    %44 = vector.broadcast %43 : vector<16x1xf32> to vector<16x256xf32>
    %45 = arith.mulf %41, %44 : vector<16x256xf32>
    %46 = arith.addf %40, %45 : vector<16x256xf32>
    %c0_17 = arith.constant 0 : index
    %c129 = arith.constant 129 : index
    %47 = vector.load %arg12[%c0_17, %c129] : memref<16x512xf32, #tpu.memory_space<vmem>>, vector<16x256xf32>
    %48 = vector.extract_strided_slice %5 {offsets = [2, 0, 0], sizes = [1, 1, 256], strides = [1, 1, 1]} : vector<3x1x256xf32> to vector<1x1x256xf32>
    %49 = vector.shape_cast %48 : vector<1x1x256xf32> to vector<1x256xf32>
    %50 = vector.broadcast %49 : vector<1x256xf32> to vector<16x256xf32>
    %51 = arith.mulf %47, %50 : vector<16x256xf32>
    %52 = vector.extract_strided_slice %4 {offsets = [1, 2, 0, 0], sizes = [1, 1, 16, 1], strides = [1, 1, 1, 1]} : vector<3x3x16x1xf32> to vector<1x1x16x1xf32>
    %53 = vector.shape_cast %52 : vector<1x1x16x1xf32> to vector<16x1xf32>
    %54 = vector.broadcast %53 : vector<16x1xf32> to vector<16x256xf32>
    %55 = arith.mulf %51, %54 : vector<16x256xf32>
    %56 = arith.addf %46, %55 : vector<16x256xf32>
    %c0_18 = arith.constant 0 : index
    %c143 = arith.constant 143 : index
    %57 = vector.load %arg12[%c0_18, %c143] : memref<16x512xf32, #tpu.memory_space<vmem>>, vector<16x256xf32>
    %58 = vector.extract_strided_slice %5 {offsets = [0, 0, 0], sizes = [1, 1, 256], strides = [1, 1, 1]} : vector<3x1x256xf32> to vector<1x1x256xf32>
    %59 = vector.shape_cast %58 : vector<1x1x256xf32> to vector<1x256xf32>
    %60 = vector.broadcast %59 : vector<1x256xf32> to vector<16x256xf32>
    %61 = arith.mulf %57, %60 : vector<16x256xf32>
    %62 = vector.extract_strided_slice %4 {offsets = [2, 0, 0, 0], sizes = [1, 1, 16, 1], strides = [1, 1, 1, 1]} : vector<3x3x16x1xf32> to vector<1x1x16x1xf32>
    %63 = vector.shape_cast %62 : vector<1x1x16x1xf32> to vector<16x1xf32>
    %64 = vector.broadcast %63 : vector<16x1xf32> to vector<16x256xf32>
    %65 = arith.mulf %61, %64 : vector<16x256xf32>
    %66 = arith.addf %56, %65 : vector<16x256xf32>
    %c0_19 = arith.constant 0 : index
    %c144 = arith.constant 144 : index
    %67 = vector.load %arg12[%c0_19, %c144] : memref<16x512xf32, #tpu.memory_space<vmem>>, vector<16x256xf32>
    %68 = vector.extract_strided_slice %4 {offsets = [2, 1, 0, 0], sizes = [1, 1, 16, 1], strides = [1, 1, 1, 1]} : vector<3x3x16x1xf32> to vector<1x1x16x1xf32>
    %69 = vector.shape_cast %68 : vector<1x1x16x1xf32> to vector<16x1xf32>
    %70 = vector.broadcast %69 : vector<16x1xf32> to vector<16x256xf32>
    %71 = arith.mulf %67, %70 : vector<16x256xf32>
    %72 = arith.addf %66, %71 : vector<16x256xf32>
    %c0_20 = arith.constant 0 : index
    %c145 = arith.constant 145 : index
    %73 = vector.load %arg12[%c0_20, %c145] : memref<16x512xf32, #tpu.memory_space<vmem>>, vector<16x256xf32>
    %74 = vector.extract_strided_slice %5 {offsets = [2, 0, 0], sizes = [1, 1, 256], strides = [1, 1, 1]} : vector<3x1x256xf32> to vector<1x1x256xf32>
    %75 = vector.shape_cast %74 : vector<1x1x256xf32> to vector<1x256xf32>
    %76 = vector.broadcast %75 : vector<1x256xf32> to vector<16x256xf32>
    %77 = arith.mulf %73, %76 : vector<16x256xf32>
    %78 = vector.extract_strided_slice %4 {offsets = [2, 2, 0, 0], sizes = [1, 1, 16, 1], strides = [1, 1, 1, 1]} : vector<3x3x16x1xf32> to vector<1x1x16x1xf32>
    %79 = vector.shape_cast %78 : vector<1x1x16x1xf32> to vector<16x1xf32>
    %80 = vector.broadcast %79 : vector<16x1xf32> to vector<16x256xf32>
    %81 = arith.mulf %77, %80 : vector<16x256xf32>
    %82 = arith.addf %72, %81 : vector<16x256xf32>
    %c0_21 = arith.constant 0 : index
    %c0_22 = arith.constant 0 : index
    %83 = vector.load %arg2[%c0_21, %c0_22] : memref<16x1xf32, #tpu.memory_space<vmem>>, vector<16x1xf32>
    %84 = vector.broadcast %83 : vector<16x1xf32> to vector<16x256xf32>
    %85 = arith.addf %82, %84 : vector<16x256xf32>
    %cst_23 = arith.constant 0.000000e+00 : f32
    %86 = vector.broadcast %cst_23 : f32 to vector<16x256xf32>
    %87 = arith.maximumf %85, %86 : vector<16x256xf32>
    %cst_24 = arith.constant 1.000000e+00 : f32
    %88 = vector.broadcast %cst_24 : f32 to vector<1x256xf32>
    %c0_25 = arith.constant 0 : index
    %c0_26 = arith.constant 0 : index
    %89 = vector.load %arg4[%c0_25, %c0_26] : memref<128x8xf32, #tpu.memory_space<vmem>>, vector<128x8xf32>
    %c0_27 = arith.constant 0 : index
    %c0_28 = arith.constant 0 : index
    %90 = vector.load %arg5[%c0_27, %c0_28] : memref<128x1xf32, #tpu.memory_space<vmem>>, vector<128x1xf32>
    %c0_29 = arith.constant 0 : index
    %c0_30 = arith.constant 0 : index
    %91 = vector.load %arg6[%c0_29, %c0_30] : memref<128x128xf32, #tpu.memory_space<vmem>>, vector<128x128xf32>
    %c0_31 = arith.constant 0 : index
    %c0_32 = arith.constant 0 : index
    %92 = vector.load %arg7[%c0_31, %c0_32] : memref<1x128xf32, #tpu.memory_space<vmem>>, vector<1x128xf32>
    %c0_33 = arith.constant 0 : index
    %c0_34 = arith.constant 0 : index
    %93 = vector.load %arg8[%c0_33, %c0_34] : memref<1x128xf32, #tpu.memory_space<vmem>>, vector<1x128xf32>
    %94 = vector.extract_strided_slice %87 {offsets = [0, 0], sizes = [8, 256], strides = [1, 1]} : vector<16x256xf32> to vector<8x256xf32>
    %cst_35 = arith.constant dense<0.000000e+00> : vector<128x256xf32>
    %95 = tpu.matmul %89, %94, %cst_35 {dimension_numbers = #tpu.dot_dimension_numbers<[1], [0], [0], [1], [0, 0, 1, 1], [], []>} : vector<128x8xf32>, vector<8x256xf32>, vector<128x256xf32> -> vector<128x256xf32>
    %96 = vector.broadcast %90 : vector<128x1xf32> to vector<128x256xf32>
    %97 = arith.addf %95, %96 : vector<128x256xf32>
    %cst_36 = arith.constant 0.000000e+00 : f32
    %98 = vector.broadcast %cst_36 : f32 to vector<128x256xf32>
    %99 = arith.maximumf %97, %98 : vector<128x256xf32>
    %cst_37 = arith.constant dense<0.000000e+00> : vector<1x128xf32>
    %100 = tpu.matmul %88, %99, %cst_37 {dimension_numbers = #tpu.dot_dimension_numbers<[1], [1], [0], [0], [0, 0, 1, 0], [], []>} : vector<1x256xf32>, vector<128x256xf32>, vector<1x128xf32> -> vector<1x128xf32>
    %cst_38 = arith.constant 3.906250e-03 : f32
    %101 = vector.broadcast %cst_38 : f32 to vector<1x128xf32>
    %102 = arith.mulf %100, %101 : vector<1x128xf32>
    %cst_39 = arith.constant dense<0.000000e+00> : vector<1x128xf32>
    %103 = tpu.matmul %102, %91, %cst_39 {dimension_numbers = #tpu.dot_dimension_numbers<[1], [0], [0], [1], [0, 0, 1, 1], [], []>} : vector<1x128xf32>, vector<128x128xf32>, vector<1x128xf32> -> vector<1x128xf32>
    %104 = arith.addf %103, %92 : vector<1x128xf32>
    %cst_40 = arith.constant 1.000000e+00 : f32
    %105 = vector.broadcast %cst_40 : f32 to vector<1x128xf32>
    %106 = arith.subf %105, %93 : vector<1x128xf32>
    %cst_41 = arith.constant 1.000000e+30 : f32
    %107 = vector.broadcast %cst_41 : f32 to vector<1x128xf32>
    %108 = arith.mulf %106, %107 : vector<1x128xf32>
    %109 = arith.subf %104, %108 : vector<1x128xf32>
    %cst_42 = arith.constant dense<0xFF800000> : vector<1xf32>
    %110 = vector.multi_reduction <maximumf>, %109, %cst_42 [1] : vector<1x128xf32> to vector<1xf32>
    %111 = vector.shape_cast %110 : vector<1xf32> to vector<1x1xf32>
    %112 = vector.broadcast %111 : vector<1x1xf32> to vector<1x128xf32>
    %113 = arith.subf %109, %112 : vector<1x128xf32>
    %114 = math.exp %113 : vector<1x128xf32>
    %cst_43 = arith.constant dense<0.000000e+00> : vector<1xf32>
    %115 = vector.multi_reduction <add>, %114, %cst_43 [1] : vector<1x128xf32> to vector<1xf32>
    %116 = vector.shape_cast %115 : vector<1xf32> to vector<1x1xf32>
    %117 = vector.broadcast %116 : vector<1x1xf32> to vector<1x128xf32>
    %118 = arith.divf %114, %117 : vector<1x128xf32>
    %c0_44 = arith.constant 0 : index
    %c0_45 = arith.constant 0 : index
    %119 = vector.load %arg11[%c0_44, %c0_45] : memref<2x128xf32, #tpu.memory_space<vmem>>, vector<1x128xf32>
    tpu.vector_store %arg11[%c0_44, %c0_45], %102 {strides = array<i32>} : memref<2x128xf32, #tpu.memory_space<vmem>>, vector<1x128xf32>,
    %c0_46 = arith.constant 0 : index
    %c0_47 = arith.constant 0 : index
    %120 = vector.load %arg10[%c0_46, %c0_47] : memref<2x128xf32, #tpu.memory_space<vmem>>, vector<1x128xf32>
    tpu.vector_store %arg10[%c0_46, %c0_47], %104 {strides = array<i32>} : memref<2x128xf32, #tpu.memory_space<vmem>>, vector<1x128xf32>,
    %c0_48 = arith.constant 0 : index
    %c0_49 = arith.constant 0 : index
    %121 = vector.load %arg9[%c0_48, %c0_49] : memref<2x128xf32, #tpu.memory_space<vmem>>, vector<1x128xf32>
    tpu.vector_store %arg9[%c0_48, %c0_49], %118 {strides = array<i32>} : memref<2x128xf32, #tpu.memory_space<vmem>>, vector<1x128xf32>,
    %122 = vector.extract_strided_slice %87 {offsets = [8, 0], sizes = [8, 256], strides = [1, 1]} : vector<16x256xf32> to vector<8x256xf32>
    %cst_50 = arith.constant dense<0.000000e+00> : vector<128x256xf32>
    %123 = tpu.matmul %89, %122, %cst_50 {dimension_numbers = #tpu.dot_dimension_numbers<[1], [0], [0], [1], [0, 0, 1, 1], [], []>} : vector<128x8xf32>, vector<8x256xf32>, vector<128x256xf32> -> vector<128x256xf32>
    %124 = vector.broadcast %90 : vector<128x1xf32> to vector<128x256xf32>
    %125 = arith.addf %123, %124 : vector<128x256xf32>
    %cst_51 = arith.constant 0.000000e+00 : f32
    %126 = vector.broadcast %cst_51 : f32 to vector<128x256xf32>
    %127 = arith.maximumf %125, %126 : vector<128x256xf32>
    %cst_52 = arith.constant dense<0.000000e+00> : vector<1x128xf32>
    %128 = tpu.matmul %88, %127, %cst_52 {dimension_numbers = #tpu.dot_dimension_numbers<[1], [1], [0], [0], [0, 0, 1, 0], [], []>} : vector<1x256xf32>, vector<128x256xf32>, vector<1x128xf32> -> vector<1x128xf32>
    %cst_53 = arith.constant 3.906250e-03 : f32
    %129 = vector.broadcast %cst_53 : f32 to vector<1x128xf32>
    %130 = arith.mulf %128, %129 : vector<1x128xf32>
    %cst_54 = arith.constant dense<0.000000e+00> : vector<1x128xf32>
    %131 = tpu.matmul %130, %91, %cst_54 {dimension_numbers = #tpu.dot_dimension_numbers<[1], [0], [0], [1], [0, 0, 1, 1], [], []>} : vector<1x128xf32>, vector<128x128xf32>, vector<1x128xf32> -> vector<1x128xf32>
    %132 = arith.addf %131, %92 : vector<1x128xf32>
    %cst_55 = arith.constant 1.000000e+00 : f32
    %133 = vector.broadcast %cst_55 : f32 to vector<1x128xf32>
    %134 = arith.subf %133, %93 : vector<1x128xf32>
    %cst_56 = arith.constant 1.000000e+30 : f32
    %135 = vector.broadcast %cst_56 : f32 to vector<1x128xf32>
    %136 = arith.mulf %134, %135 : vector<1x128xf32>
    %137 = arith.subf %132, %136 : vector<1x128xf32>
    %cst_57 = arith.constant dense<0xFF800000> : vector<1xf32>
    %138 = vector.multi_reduction <maximumf>, %137, %cst_57 [1] : vector<1x128xf32> to vector<1xf32>
    %139 = vector.shape_cast %138 : vector<1xf32> to vector<1x1xf32>
    %140 = vector.broadcast %139 : vector<1x1xf32> to vector<1x128xf32>
    %141 = arith.subf %137, %140 : vector<1x128xf32>
    %142 = math.exp %141 : vector<1x128xf32>
    %cst_58 = arith.constant dense<0.000000e+00> : vector<1xf32>
    %143 = vector.multi_reduction <add>, %142, %cst_58 [1] : vector<1x128xf32> to vector<1xf32>
    %144 = vector.shape_cast %143 : vector<1xf32> to vector<1x1xf32>
    %145 = vector.broadcast %144 : vector<1x1xf32> to vector<1x128xf32>
    %146 = arith.divf %142, %145 : vector<1x128xf32>
    %c1 = arith.constant 1 : index
    %c0_59 = arith.constant 0 : index
    %147 = vector.load %arg11[%c1, %c0_59] : memref<2x128xf32, #tpu.memory_space<vmem>>, vector<1x128xf32>
    tpu.vector_store %arg11[%c1, %c0_59], %130 {strides = array<i32>} : memref<2x128xf32, #tpu.memory_space<vmem>>, vector<1x128xf32>,
    %c1_60 = arith.constant 1 : index
    %c0_61 = arith.constant 0 : index
    %148 = vector.load %arg10[%c1_60, %c0_61] : memref<2x128xf32, #tpu.memory_space<vmem>>, vector<1x128xf32>
    tpu.vector_store %arg10[%c1_60, %c0_61], %132 {strides = array<i32>} : memref<2x128xf32, #tpu.memory_space<vmem>>, vector<1x128xf32>,
    %c1_62 = arith.constant 1 : index
    %c0_63 = arith.constant 0 : index
    %149 = vector.load %arg9[%c1_62, %c0_63] : memref<2x128xf32, #tpu.memory_space<vmem>>, vector<1x128xf32>
    tpu.vector_store %arg9[%c1_62, %c0_63], %146 {strides = array<i32>} : memref<2x128xf32, #tpu.memory_space<vmem>>, vector<1x128xf32>,
    return
  }
}

</mosaic_0001>

<llo_original>
// kernel: mobilenet_forward.1
$region0: #{mobilenet_forward.1}
  #allocation0 [shape = 'u32[]', space=smem, size = 0x4, offset = 0x4, fixed_abs, tag = 'smem constant byte address 0x4 - core index']
  #allocation1 [shape = 'u32[144,128]{1,0:T(1,128)}', space=vmem, size = 0x12000, scoped, tag = 'internal scratch']
  #allocation2 [shape = 'f32[16,512]{1,0:T(8,128)}', space=vmem, size = 0x8000, scoped, tag = 'scratch operand']
  %s0 = inlined_call_operand.vmem [shape: f32[16,256], index: 0, kind: input, shape index: {}]
  %s1 = inlined_call_operand.vmem [shape: f32[3,3,16,1], index: 1, kind: input, shape index: {}]
  %s2 = inlined_call_operand.vmem [shape: f32[16,1], index: 2, kind: input, shape index: {}]
  %s3 = inlined_call_operand.vmem [shape: f32[3,1,256], index: 3, kind: input, shape index: {}]
  %s4 = inlined_call_operand.vmem [shape: f32[128,8], index: 4, kind: input, shape index: {}]
  %s5 = inlined_call_operand.vmem [shape: f32[128,1], index: 5, kind: input, shape index: {}]
  %s6 = inlined_call_operand.vmem [shape: f32[128,128], index: 6, kind: input, shape index: {}]
  %s7 = inlined_call_operand.vmem [shape: f32[1,128], index: 7, kind: input, shape index: {}]
  %s8 = inlined_call_operand.vmem [shape: f32[1,128], index: 8, kind: input, shape index: {}]
  %s9 = inlined_call_operand.hbm [shape: f32[2,128], index: 9, kind: output, shape index: {0}]
  %s10 = inlined_call_operand.hbm [shape: f32[2,128], index: 10, kind: output, shape index: {1}]
  %s11 = inlined_call_operand.hbm [shape: f32[2,128], index: 11, kind: output, shape index: {2}]
  %12 = xla_tuple %s9, %s10, %s11
  %s13 = sld [smem:[#allocation0]]
  $region62: #{mobilenet_forward.1} parent=0
    _
  %s15 = ssub.s32 1, %s13
  %s16 = scalar_select 0, %s15, %s13
  $region1: #{mobilenet_forward.1} parent=0
    #allocation3 [shape = 'u8[1024]{0}', space=vmem, size = 0x400, scoped, tag = 'output window, operand 0, single buffered']
    #allocation4 [shape = 's32[1]{0}', space=sflag, size = 0x4, scoped, tag = 'scoped memory for mobilenet_forward.1']
    #allocation5 [shape = 'u8[1024]{0}', space=vmem, size = 0x400, scoped, tag = 'output window, operand 1, single buffered']
    #allocation6 [shape = 's32[1]{0}', space=sflag, size = 0x4, scoped, tag = 'scoped memory for mobilenet_forward.1']
    #allocation7 [shape = 'u8[1024]{0}', space=vmem, size = 0x400, scoped, tag = 'output window, operand 2, single buffered']
    %17 = vsyncpa [#allocation4], 0
    %18 = vsyncpa [#allocation6], 0
    // Predicated region
    $region2: #{mobilenet_forward.1} parent=1 // pred_check
      _
    $region3: #{mobilenet_forward.1} parent=1 // pred_check_branch
      %20 = sbr.rel (0) target = $region5
    $region4: #{mobilenet_forward.1} parent=1 // pred_region
      _
    $region5: #{mobilenet_forward.1} parent=1 // pred_fallthru
      _
    // Predicated region
    $region6: #{mobilenet_forward.1} parent=1 // pred_check
      _
    $region7: #{mobilenet_forward.1} parent=1 // pred_check_branch
      %22 = sbr.rel (0) target = $region9
    $region8: #{mobilenet_forward.1} parent=1 // pred_region
      _
    $region9: #{mobilenet_forward.1} parent=1 // pred_fallthru
      _
    // Predicated region
    $region10: #{mobilenet_forward.1} parent=1 // pred_check
      _
    $region11: #{mobilenet_forward.1} parent=1 // pred_check_branch
      %24 = sbr.rel (0) target = $region13
    $region12: #{mobilenet_forward.1} parent=1 // pred_region
      _
    $region13: #{mobilenet_forward.1} parent=1 // pred_fallthru
      _
    // Predicated region
    $region14: #{mobilenet_forward.1} parent=1 // pred_check
      _
    $region15: #{mobilenet_forward.1} parent=1 // pred_check_branch
      %26 = sbr.rel (0) target = $region17
    $region16: #{mobilenet_forward.1} parent=1 // pred_region
      _
    $region17: #{mobilenet_forward.1} parent=1 // pred_fallthru
      _
    // Predicated region
    $region18: #{mobilenet_forward.1} parent=1 // pred_check
      _
    $region19: #{mobilenet_forward.1} parent=1 // pred_check_branch
      %28 = sbr.rel (0) target = $region21
    $region20: #{mobilenet_forward.1} parent=1 // pred_region
      _
    $region21: #{mobilenet_forward.1} parent=1 // pred_fallthru
      _
    // Predicated region
    $region22: #{mobilenet_forward.1} parent=1 // pred_check
      _
    $region23: #{mobilenet_forward.1} parent=1 // pred_check_branch
      %30 = sbr.rel (0) target = $region25
    $region24: #{mobilenet_forward.1} parent=1 // pred_region
      _
    $region25: #{mobilenet_forward.1} parent=1 // pred_fallthru
      _
    // Predicated region
    $region26: #{mobilenet_forward.1} parent=1 // pred_check
      _
    $region27: #{mobilenet_forward.1} parent=1 // pred_check_branch
      %32 = sbr.rel (0) target = $region29
    $region28: #{mobilenet_forward.1} parent=1 // pred_region
      _
    $region29: #{mobilenet_forward.1} parent=1 // pred_fallthru
      _
    // Predicated region
    $region30: #{mobilenet_forward.1} parent=1 // pred_check
      _
    $region31: #{mobilenet_forward.1} parent=1 // pred_check_branch
      %34 = sbr.rel (0) target = $region33
    $region32: #{mobilenet_forward.1} parent=1 // pred_region
      _
    $region33: #{mobilenet_forward.1} parent=1 // pred_fallthru
      _
    // Predicated region
    $region34: #{mobilenet_forward.1} parent=1 // pred_check
      _
    $region35: #{mobilenet_forward.1} parent=1 // pred_check_branch
      %36 = sbr.rel (0) target = $region37
    $region36: #{mobilenet_forward.1} parent=1 // pred_region
      _
    $region37: #{mobilenet_forward.1} parent=1 // pred_fallthru
      _
    %37 = vst [vmem:[#allocation2] sm:$0xff] 0.0
    %38 = vst [vmem:[#allocation2 + $0x8] sm:$0xff] 0.0
    %39 = vst [vmem:[#allocation2 + $0x10] sm:$0xff] 0.0
    %40 = vst [vmem:[#allocation2 + $0x18] sm:$0xff] 0.0
    %41 = vst [vmem:[#allocation2 + $0x20] sm:$0xff] 0.0
    %42 = vst [vmem:[#allocation2 + $0x28] sm:$0xff] 0.0
    %43 = vst [vmem:[#allocation2 + $0x30] sm:$0xff] 0.0
    %44 = vst [vmem:[#allocation2 + $0x38] sm:$0xff] 0.0
    %v45 = vld [vmem:[%s0] sm:$0xff]
    %v46 = vld [vmem:[%s0 + $0x8] sm:$0xff]
    %v47 = vld [vmem:[%s0 + $0x10] sm:$0xff]
    %v48 = vld [vmem:[%s0 + $0x18] sm:$0xff]
    %49 = vst [vmem:[#allocation2 + $0x8] sm:$0xff] %v45
    %50 = vst [vmem:[#allocation2 + $0x10] sm:$0xff] %v46
    %51 = vst [vmem:[#allocation2 + $0x28] sm:$0xff] %v47
    %52 = vst [vmem:[#allocation2 + $0x30] sm:$0xff] %v48
    %v53 = vld [vmem:[%s1] sm:$0xff]
    %v54 = vld [vmem:[%s1 + $0x8] sm:$0xff]
    %v55 = vld [vmem:[%s1 + $0x10] sm:$0xff]
    %v56 = vld [vmem:[%s1 + $0x18] sm:$0xff]
    %v57 = vld [vmem:[%s1 + $0x20] sm:$0xff]
    %v58 = vld [vmem:[%s1 + $0x28] sm:$0xff]
    %v59 = vld [vmem:[%s1 + $0x30] sm:$0xff]
    %v60 = vld [vmem:[%s1 + $0x38] sm:$0xff]
    %v61 = vld [vmem:[%s1 + $0x40] sm:$0xff]
    %v62 = vld [vmem:[%s1 + $0x48] sm:$0xff]
    %v63 = vld [vmem:[%s1 + $0x50] sm:$0xff]
    %v64 = vld [vmem:[%s1 + $0x58] sm:$0xff]
    %v65 = vld [vmem:[%s1 + $0x60] sm:$0xff]
    %v66 = vld [vmem:[%s1 + $0x68] sm:$0xff]
    %v67 = vld [vmem:[%s1 + $0x70] sm:$0xff]
    %v68 = vld [vmem:[%s1 + $0x78] sm:$0xff]
    %v69 = vld [vmem:[%s1 + $0x80] sm:$0xff]
    %v70 = vld [vmem:[%s1 + $0x88] sm:$0xff]
    %v71 = vld [vmem:[%s3] sm:$0x3]
    %v72 = vld [vmem:[%s3 + $0x4] sm:$0x3]
    %v73 = vld [vmem:[#allocation2] sm:$0xff]
    %v74 = vld [vmem:[#allocation2 + $0x8] sm:$0xff]
    %v75 = vld [vmem:[#allocation2 + $0x10] sm:$0xff]
    %v76 = vld [vmem:[#allocation2 + $0x20] sm:$0xff]
    %v77 = vld [vmem:[#allocation2 + $0x28] sm:$0xff]
    %v78 = vld [vmem:[#allocation2 + $0x30] sm:$0xff]
    %v80 = vlaneseq
    %v81 = vshrl.u32 %v80, 7
    %v82 = vsub.s32 0, %v81
    %v83 = vrot.slane %v71, %v82
    %v84 = vlaneseq
    %v85 = vshrl.u32 %v84, 7
    %v86 = vsub.s32 1, %v85
    %v87 = vrot.slane %v71, %v86
    %88 = vrot.lane.b32.xlu0 %v83, 111
    %v89 = vpop.permute.xlu0 %88
    %90 = vrot.lane.b32.xlu0 %v87, 111
    %v91 = vpop.permute.xlu0 %90
    %vm92 = vcmask 908288
    %v93 = vsel %vm92, %v89, %v91
    %v97 = vmul.f32 %v73, %v89
    %v98 = vmul.f32 %v74, %v93
    %v99 = vmul.f32 %v75, %v91
    %v100 = vmul.f32 %v76, %v89
    %v101 = vmul.f32 %v77, %v93
    %v102 = vmul.f32 %v78, %v91
    %104 = vset.pattern.permute.xlu0 0
    %105 = vperm.xlu0 %104, %v53
    %v106 = vpop.permute.xlu0 %105
    %109 = vset.pattern.permute.xlu0 0
    %110 = vperm.xlu0 %109, %v54
    %v111 = vpop.permute.xlu0 %110
    %v113 = vmul.f32 %v97, %v106
    %v114 = vmul.f32 %v98, %v106
    %v115 = vmul.f32 %v99, %v106
    %v116 = vmul.f32 %v100, %v111
    %v117 = vmul.f32 %v101, %v111
    %v118 = vmul.f32 %v102, %v111
    %120 = vset.pattern.permute.xlu0 0
    %121 = vperm.xlu0 %120, %v55
    %v122 = vpop.permute.xlu0 %121
    %125 = vset.pattern.permute.xlu0 0
    %126 = vperm.xlu0 %125, %v56
    %v127 = vpop.permute.xlu0 %126
    %v129 = vmul.f32 %v73, %v122
    %v130 = vmul.f32 %v74, %v122
    %v131 = vmul.f32 %v75, %v122
    %v132 = vmul.f32 %v76, %v127
    %v133 = vmul.f32 %v77, %v127
    %v134 = vmul.f32 %v78, %v127
    %141 = vrot.lane.b32.xlu0 %v129, 127
    %v142 = vpop.permute.xlu0 %141
    %143 = vrot.lane.b32.xlu0 %v130, 127
    %v144 = vpop.permute.xlu0 %143
    %145 = vrot.lane.b32.xlu0 %v131, 127
    %v146 = vpop.permute.xlu0 %145
    %147 = vrot.lane.b32.xlu0 %v132, 127
    %v148 = vpop.permute.xlu0 %147
    %149 = vrot.lane.b32.xlu0 %v133, 127
    %v150 = vpop.permute.xlu0 %149
    %151 = vrot.lane.b32.xlu0 %v134, 127
    %v152 = vpop.permute.xlu0 %151
    %vm153 = vcmask 1039360
    %v154 = vsel %vm153, %v142, %v144
    %v155 = vsel %vm153, %v144, %v146
    %v156 = vsel %vm153, %v148, %v150
    %v157 = vsel %vm153, %v150, %v152
    %v164 = vadd.f32 %v113, %v154
    %v165 = vadd.f32 %v114, %v155
    %v166 = vadd.f32 %v115, %v146
    %v167 = vadd.f32 %v116, %v156
    %v168 = vadd.f32 %v117, %v157
    %v169 = vadd.f32 %v118, %v152
    %v171 = vlaneseq
    %v172 = vshrl.u32 %v171, 7
    %v173 = vsub.s32 0, %v172
    %v174 = vrot.slane %v72, %v173
    %v175 = vlaneseq
    %v176 = vshrl.u32 %v175, 7
    %v177 = vsub.s32 1, %v176
    %v178 = vrot.slane %v72, %v177
    %179 = vrot.lane.b32.xlu0 %v174, 113
    %v180 = vpop.permute.xlu0 %179
    %181 = vrot.lane.b32.xlu0 %v178, 113
    %v182 = vpop.permute.xlu0 %181
    %vm183 = vcmask 924672
    %v184 = vsel %vm183, %v180, %v182
    %v188 = vmul.f32 %v73, %v180
    %v189 = vmul.f32 %v74, %v184
    %v190 = vmul.f32 %v75, %v182
    %v191 = vmul.f32 %v76, %v180
    %v192 = vmul.f32 %v77, %v184
    %v193 = vmul.f32 %v78, %v182
    %195 = vset.pattern.permute.xlu0 0
    %196 = vperm.xlu0 %195, %v57
    %v197 = vpop.permute.xlu0 %196
    %200 = vset.pattern.permute.xlu0 0
    %201 = vperm.xlu0 %200, %v58
    %v202 = vpop.permute.xlu0 %201
    %v204 = vmul.f32 %v188, %v197
    %v205 = vmul.f32 %v189, %v197
    %v206 = vmul.f32 %v190, %v197
    %v207 = vmul.f32 %v191, %v202
    %v208 = vmul.f32 %v192, %v202
    %v209 = vmul.f32 %v193, %v202
    %216 = vrot.lane.b32.xlu0 %v204, 126
    %v217 = vpop.permute.xlu0 %216
    %218 = vrot.lane.b32.xlu0 %v205, 126
    %v219 = vpop.permute.xlu0 %218
    %220 = vrot.lane.b32.xlu0 %v206, 126
    %v221 = vpop.permute.xlu0 %220
    %222 = vrot.lane.b32.xlu0 %v207, 126
    %v223 = vpop.permute.xlu0 %222
    %224 = vrot.lane.b32.xlu0 %v208, 126
    %v225 = vpop.permute.xlu0 %224
    %226 = vrot.lane.b32.xlu0 %v209, 126
    %v227 = vpop.permute.xlu0 %226
    %vm228 = vcmask 1031168
    %v229 = vsel %vm228, %v217, %v219
    %v230 = vsel %vm228, %v219, %v221
    %v231 = vsel %vm228, %v223, %v225
    %v232 = vsel %vm228, %v225, %v227
    %v239 = vadd.f32 %v164, %v229
    %v240 = vadd.f32 %v165, %v230
    %v241 = vadd.f32 %v166, %v221
    %v242 = vadd.f32 %v167, %v231
    %v243 = vadd.f32 %v168, %v232
    %v244 = vadd.f32 %v169, %v227
    %245 = vrot.lane.b32.xlu0 %v83, 127
    %v246 = vpop.permute.xlu0 %245
    %247 = vrot.lane.b32.xlu0 %v87, 127
    %v248 = vpop.permute.xlu0 %247
    %v249 = vsel %vm153, %v246, %v248
    %v253 = vmul.f32 %v73, %v246
    %v254 = vmul.f32 %v74, %v249
    %v255 = vmul.f32 %v75, %v248
    %v256 = vmul.f32 %v76, %v246
    %v257 = vmul.f32 %v77, %v249
    %v258 = vmul.f32 %v78, %v248
    %260 = vset.pattern.permute.xlu0 0
    %261 = vperm.xlu0 %260, %v59
    %v262 = vpop.permute.xlu0 %261
    %265 = vset.pattern.permute.xlu0 0
    %266 = vperm.xlu0 %265, %v60
    %v267 = vpop.permute.xlu0 %266
    %v269 = vmul.f32 %v253, %v262
    %v270 = vmul.f32 %v254, %v262
    %v271 = vmul.f32 %v255, %v262
    %v272 = vmul.f32 %v256, %v267
    %v273 = vmul.f32 %v257, %v267
    %v274 = vmul.f32 %v258, %v267
    %281 = vrot.lane.b32.xlu0 %v269, 112
    %v282 = vpop.permute.xlu0 %281
    %283 = vrot.lane.b32.xlu0 %v270, 112
    %v284 = vpop.permute.xlu0 %283
    %285 = vrot.lane.b32.xlu0 %v271, 112
    %v286 = vpop.permute.xlu0 %285
    %287 = vrot.lane.b32.xlu0 %v272, 112
    %v288 = vpop.permute.xlu0 %287
    %289 = vrot.lane.b32.xlu0 %v273, 112
    %v290 = vpop.permute.xlu0 %289
    %291 = vrot.lane.b32.xlu0 %v274, 112
    %v292 = vpop.permute.xlu0 %291
    %vm293 = vcmask 916480
    %v294 = vsel %vm293, %v282, %v284
    %v295 = vsel %vm293, %v284, %v286
    %v296 = vsel %vm293, %v288, %v290
    %v297 = vsel %vm293, %v290, %v292
    %v304 = vadd.f32 %v239, %v294
    %v305 = vadd.f32 %v240, %v295
    %v306 = vadd.f32 %v241, %v286
    %v307 = vadd.f32 %v242, %v296
    %v308 = vadd.f32 %v243, %v297
    %v309 = vadd.f32 %v244, %v292
    %311 = vset.pattern.permute.xlu0 0
    %312 = vperm.xlu0 %311, %v61
    %v313 = vpop.permute.xlu0 %312
    %316 = vset.pattern.permute.xlu0 0
    %317 = vperm.xlu0 %316, %v62
    %v318 = vpop.permute.xlu0 %317
    %v320 = vmul.f32 %v74, %v313
    %v321 = vmul.f32 %v75, %v313
    %v322 = vmul.f32 %v77, %v318
    %v323 = vmul.f32 %v78, %v318
    %328 = vrot.lane.b32.xlu0 %v320, 111
    %v329 = vpop.permute.xlu0 %328
    %330 = vrot.lane.b32.xlu0 %v321, 111
    %v331 = vpop.permute.xlu0 %330
    %332 = vrot.lane.b32.xlu0 %v322, 111
    %v333 = vpop.permute.xlu0 %332
    %334 = vrot.lane.b32.xlu0 %v323, 111
    %v335 = vpop.permute.xlu0 %334
    %v336 = vsel %vm92, %v329, %v331
    %v337 = vsel %vm92, %v333, %v335
    %v344 = vadd.f32 %v304, %v329
    %v345 = vadd.f32 %v305, %v336
    %v346 = vadd.f32 %v306, %v331
    %v347 = vadd.f32 %v307, %v333
    %v348 = vadd.f32 %v308, %v337
    %v349 = vadd.f32 %v309, %v335
    %v350 = vld [vmem:[#allocation2 + $0x8] sm:$0xff]
    %v351 = vld [vmem:[#allocation2 + $0x10] sm:$0xff]
    %v352 = vld [vmem:[#allocation2 + $0x18] sm:$0xff]
    %v353 = vld [vmem:[#allocation2 + $0x28] sm:$0xff]
    %v354 = vld [vmem:[#allocation2 + $0x30] sm:$0xff]
    %v355 = vld [vmem:[#allocation2 + $0x38] sm:$0xff]
    %356 = vrot.lane.b32.xlu0 %v174, 1
    %v357 = vpop.permute.xlu0 %356
    %358 = vrot.lane.b32.xlu0 %v178, 1
    %v359 = vpop.permute.xlu0 %358
    %vm360 = vcmask 7168
    %v361 = vsel %vm360, %v357, %v359
    %v365 = vmul.f32 %v350, %v357
    %v366 = vmul.f32 %v351, %v361
    %v367 = vmul.f32 %v352, %v359
    %v368 = vmul.f32 %v353, %v357
    %v369 = vmul.f32 %v354, %v361
    %v370 = vmul.f32 %v355, %v359
    %372 = vset.pattern.permute.xlu0 0
    %373 = vperm.xlu0 %372, %v63
    %v374 = vpop.permute.xlu0 %373
    %377 = vset.pattern.permute.xlu0 0
    %378 = vperm.xlu0 %377, %v64
    %v379 = vpop.permute.xlu0 %378
    %v381 = vmul.f32 %v365, %v374
    %v382 = vmul.f32 %v366, %v374
    %v383 = vmul.f32 %v367, %v374
    %v384 = vmul.f32 %v368, %v379
    %v385 = vmul.f32 %v369, %v379
    %v386 = vmul.f32 %v370, %v379
    %393 = vrot.lane.b32.xlu0 %v381, 110
    %v394 = vpop.permute.xlu0 %393
    %395 = vrot.lane.b32.xlu0 %v382, 110
    %v396 = vpop.permute.xlu0 %395
    %397 = vrot.lane.b32.xlu0 %v383, 110
    %v398 = vpop.permute.xlu0 %397
    %399 = vrot.lane.b32.xlu0 %v384, 110
    %v400 = vpop.permute.xlu0 %399
    %401 = vrot.lane.b32.xlu0 %v385, 110
    %v402 = vpop.permute.xlu0 %401
    %403 = vrot.lane.b32.xlu0 %v386, 110
    %v404 = vpop.permute.xlu0 %403
    %vm405 = vcmask 900096
    %v406 = vsel %vm405, %v394, %v396
    %v407 = vsel %vm405, %v396, %v398
    %v408 = vsel %vm405, %v400, %v402
    %v409 = vsel %vm405, %v402, %v404
    %v416 = vadd.f32 %v344, %v394
    %v417 = vadd.f32 %v345, %v406
    %v418 = vadd.f32 %v346, %v407
    %v419 = vadd.f32 %v347, %v400
    %v420 = vadd.f32 %v348, %v408
    %v421 = vadd.f32 %v349, %v409
    %422 = vrot.lane.b32.xlu0 %v83, 15
    %v423 = vpop.permute.xlu0 %422
    %424 = vrot.lane.b32.xlu0 %v87, 15
    %v425 = vpop.permute.xlu0 %424
    %vm426 = vcmask 121856
    %v427 = vsel %vm426, %v423, %v425
    %v431 = vmul.f32 %v350, %v423
    %v432 = vmul.f32 %v351, %v427
    %v433 = vmul.f32 %v352, %v425
    %v434 = vmul.f32 %v353, %v423
    %v435 = vmul.f32 %v354, %v427
    %v436 = vmul.f32 %v355, %v425
    %438 = vset.pattern.permute.xlu0 0
    %439 = vperm.xlu0 %438, %v65
    %v440 = vpop.permute.xlu0 %439
    %443 = vset.pattern.permute.xlu0 0
    %444 = vperm.xlu0 %443, %v66
    %v445 = vpop.permute.xlu0 %444
    %v447 = vmul.f32 %v431, %v440
    %v448 = vmul.f32 %v432, %v440
    %v449 = vmul.f32 %v433, %v440
    %v450 = vmul.f32 %v434, %v445
    %v451 = vmul.f32 %v435, %v445
    %v452 = vmul.f32 %v436, %v445
    %459 = vrot.lane.b32.xlu0 %v447, 96
    %v460 = vpop.permute.xlu0 %459
    %461 = vrot.lane.b32.xlu0 %v448, 96
    %v462 = vpop.permute.xlu0 %461
    %463 = vrot.lane.b32.xlu0 %v449, 96
    %v464 = vpop.permute.xlu0 %463
    %465 = vrot.lane.b32.xlu0 %v450, 96
    %v466 = vpop.permute.xlu0 %465
    %467 = vrot.lane.b32.xlu0 %v451, 96
    %v468 = vpop.permute.xlu0 %467
    %469 = vrot.lane.b32.xlu0 %v452, 96
    %v470 = vpop.permute.xlu0 %469
    %vm471 = vcmask 785408
    %v472 = vsel %vm471, %v460, %v462
    %v473 = vsel %vm471, %v462, %v464
    %v474 = vsel %vm471, %v466, %v468
    %v475 = vsel %vm471, %v468, %v470
    %v482 = vadd.f32 %v416, %v460
    %v483 = vadd.f32 %v417, %v472
    %v484 = vadd.f32 %v418, %v473
    %v485 = vadd.f32 %v419, %v466
    %v486 = vadd.f32 %v420, %v474
    %v487 = vadd.f32 %v421, %v475
    %489 = vset.pattern.permute.xlu0 0
    %490 = vperm.xlu0 %489, %v67
    %v491 = vpop.permute.xlu0 %490
    %494 = vset.pattern.permute.xlu0 0
    %495 = vperm.xlu0 %494, %v68
    %v496 = vpop.permute.xlu0 %495
    %v498 = vmul.f32 %v350, %v491
    %v499 = vmul.f32 %v351, %v491
    %v500 = vmul.f32 %v352, %v491
    %v501 = vmul.f32 %v353, %v496
    %v502 = vmul.f32 %v354, %v496
    %v503 = vmul.f32 %v355, %v496
    %510 = vrot.lane.b32.xlu0 %v498, 95
    %v511 = vpop.permute.xlu0 %510
    %512 = vrot.lane.b32.xlu0 %v499, 95
    %v513 = vpop.permute.xlu0 %512
    %514 = vrot.lane.b32.xlu0 %v500, 95
    %v515 = vpop.permute.xlu0 %514
    %516 = vrot.lane.b32.xlu0 %v501, 95
    %v517 = vpop.permute.xlu0 %516
    %518 = vrot.lane.b32.xlu0 %v502, 95
    %v519 = vpop.permute.xlu0 %518
    %520 = vrot.lane.b32.xlu0 %v503, 95
    %v521 = vpop.permute.xlu0 %520
    %vm522 = vcmask 777216
    %v523 = vsel %vm522, %v511, %v513
    %v524 = vsel %vm522, %v513, %v515
    %v525 = vsel %vm522, %v517, %v519
    %v526 = vsel %vm522, %v519, %v521
    %v533 = vadd.f32 %v482, %v511
    %v534 = vadd.f32 %v483, %v523
    %v535 = vadd.f32 %v484, %v524
    %v536 = vadd.f32 %v485, %v517
    %v537 = vadd.f32 %v486, %v525
    %v538 = vadd.f32 %v487, %v526
    %539 = vrot.lane.b32.xlu0 %v174, 17
    %v540 = vpop.permute.xlu0 %539
    %541 = vrot.lane.b32.xlu0 %v178, 17
    %v542 = vpop.permute.xlu0 %541
    %vm543 = vcmask 138240
    %v544 = vsel %vm543, %v540, %v542
    %v548 = vmul.f32 %v350, %v540
    %v549 = vmul.f32 %v351, %v544
    %v550 = vmul.f32 %v352, %v542
    %v551 = vmul.f32 %v353, %v540
    %v552 = vmul.f32 %v354, %v544
    %v553 = vmul.f32 %v355, %v542
    %555 = vset.pattern.permute.xlu0 0
    %556 = vperm.xlu0 %555, %v69
    %v557 = vpop.permute.xlu0 %556
    %560 = vset.pattern.permute.xlu0 0
    %561 = vperm.xlu0 %560, %v70
    %v562 = vpop.permute.xlu0 %561
    %v564 = vmul.f32 %v548, %v557
    %v565 = vmul.f32 %v549, %v557
    %v566 = vmul.f32 %v550, %v557
    %v567 = vmul.f32 %v551, %v562
    %v568 = vmul.f32 %v552, %v562
    %v569 = vmul.f32 %v553, %v562
    %576 = vrot.lane.b32.xlu0 %v564, 94
    %v577 = vpop.permute.xlu0 %576
    %578 = vrot.lane.b32.xlu0 %v565, 94
    %v579 = vpop.permute.xlu0 %578
    %580 = vrot.lane.b32.xlu0 %v566, 94
    %v581 = vpop.permute.xlu0 %580
    %582 = vrot.lane.b32.xlu0 %v567, 94
    %v583 = vpop.permute.xlu0 %582
    %584 = vrot.lane.b32.xlu0 %v568, 94
    %v585 = vpop.permute.xlu0 %584
    %586 = vrot.lane.b32.xlu0 %v569, 94
    %v587 = vpop.permute.xlu0 %586
    %vm588 = vcmask 769024
    %v589 = vsel %vm588, %v577, %v579
    %v590 = vsel %vm588, %v579, %v581
    %v591 = vsel %vm588, %v583, %v585
    %v592 = vsel %vm588, %v585, %v587
    %v599 = vadd.f32 %v533, %v577
    %v600 = vadd.f32 %v534, %v589
    %v601 = vadd.f32 %v535, %v590
    %v602 = vadd.f32 %v536, %v583
    %v603 = vadd.f32 %v537, %v591
    %v604 = vadd.f32 %v538, %v592
    %v605 = vld [vmem:[%s2] sm:$0xff]
    %v606 = vld [vmem:[%s2 + $0x8] sm:$0xff]
    %608 = vset.pattern.permute.xlu0 0
    %609 = vperm.xlu0 %608, %v605
    %v610 = vpop.permute.xlu0 %609
    %613 = vset.pattern.permute.xlu0 0
    %614 = vperm.xlu0 %613, %v606
    %v615 = vpop.permute.xlu0 %614
    %v617 = vadd.f32 %v599, %v610
    %v618 = vadd.f32 %v600, %v610
    %v619 = vadd.f32 %v601, %v610
    %v620 = vadd.f32 %v602, %v615
    %v621 = vadd.f32 %v603, %v615
    %v622 = vadd.f32 %v604, %v615
    %v623 = vmax.f32 %v617, 0.0
    %v624 = vmax.f32 %v618, 0.0
    %v625 = vmax.f32 %v619, 0.0
    %v626 = vmax.f32 %v620, 0.0
    %v627 = vmax.f32 %v621, 0.0
    %v628 = vmax.f32 %v622, 0.0
    %v629 = vld [vmem:[%s4] sm:$0xff]
    %v630 = vld [vmem:[%s4 + $0x8] sm:$0xff]
    %v631 = vld [vmem:[%s4 + $0x10] sm:$0xff]
    %v632 = vld [vmem:[%s4 + $0x18] sm:$0xff]
    %v633 = vld [vmem:[%s4 + $0x20] sm:$0xff]
    %v634 = vld [vmem:[%s4 + $0x28] sm:$0xff]
    %v635 = vld [vmem:[%s4 + $0x30] sm:$0xff]
    %v636 = vld [vmem:[%s4 + $0x38] sm:$0xff]
    %v637 = vld [vmem:[%s4 + $0x40] sm:$0xff]
    %v638 = vld [vmem:[%s4 + $0x48] sm:$0xff]
    %v639 = vld [vmem:[%s4 + $0x50] sm:$0xff]
    %v640 = vld [vmem:[%s4 + $0x58] sm:$0xff]
    %v641 = vld [vmem:[%s4 + $0x60] sm:$0xff]
    %v642 = vld [vmem:[%s4 + $0x68] sm:$0xff]
    %v643 = vld [vmem:[%s4 + $0x70] sm:$0xff]
    %v644 = vld [vmem:[%s4 + $0x78] sm:$0xff]
    %v645 = vld [vmem:[%s5] sm:$0xff]
    %v646 = vld [vmem:[%s5 + $0x8] sm:$0xff]
    %v647 = vld [vmem:[%s5 + $0x10] sm:$0xff]
    %v648 = vld [vmem:[%s5 + $0x18] sm:$0xff]
    %v649 = vld [vmem:[%s5 + $0x20] sm:$0xff]
    %v650 = vld [vmem:[%s5 + $0x28] sm:$0xff]
    %v651 = vld [vmem:[%s5 + $0x30] sm:$0xff]
    %v652 = vld [vmem:[%s5 + $0x38] sm:$0xff]
    %v653 = vld [vmem:[%s5 + $0x40] sm:$0xff]
    %v654 = vld [vmem:[%s5 + $0x48] sm:$0xff]
    %v655 = vld [vmem:[%s5 + $0x50] sm:$0xff]
    %v656 = vld [vmem:[%s5 + $0x58] sm:$0xff]
    %v657 = vld [vmem:[%s5 + $0x60] sm:$0xff]
    %v658 = vld [vmem:[%s5 + $0x68] sm:$0xff]
    %v659 = vld [vmem:[%s5 + $0x70] sm:$0xff]
    %v660 = vld [vmem:[%s5 + $0x78] sm:$0xff]
    %v661 = vld [vmem:[%s6] sm:$0xff]
    %v662 = vld [vmem:[%s6 + $0x8] sm:$0xff]
    %v663 = vld [vmem:[%s6 + $0x10] sm:$0xff]
    %v664 = vld [vmem:[%s6 + $0x18] sm:$0xff]
    %v665 = vld [vmem:[%s6 + $0x20] sm:$0xff]
    %v666 = vld [vmem:[%s6 + $0x28] sm:$0xff]
    %v667 = vld [vmem:[%s6 + $0x30] sm:$0xff]
    %v668 = vld [vmem:[%s6 + $0x38] sm:$0xff]
    %v669 = vld [vmem:[%s6 + $0x40] sm:$0xff]
    %v670 = vld [vmem:[%s6 + $0x48] sm:$0xff]
    %v671 = vld [vmem:[%s6 + $0x50] sm:$0xff]
    %v672 = vld [vmem:[%s6 + $0x58] sm:$0xff]
    %v673 = vld [vmem:[%s6 + $0x60] sm:$0xff]
    %v674 = vld [vmem:[%s6 + $0x68] sm:$0xff]
    %v675 = vld [vmem:[%s6 + $0x70] sm:$0xff]
    %v676 = vld [vmem:[%s6 + $0x78] sm:$0xff]
    %v677 = vld [vmem:[%s7] sm:$0x1]
    %v678 = vld [vmem:[%s8] sm:$0x1]
    %680 = vset.pattern.permute.xlu0 0
    %681 = vperm.xlu0 %680, %v645
    %v682 = vpop.permute.xlu0 %681
    %685 = vset.pattern.permute.xlu0 0
    %686 = vperm.xlu0 %685, %v646
    %v687 = vpop.permute.xlu0 %686
    %690 = vset.pattern.permute.xlu0 0
    %691 = vperm.xlu0 %690, %v647
    %v692 = vpop.permute.xlu0 %691
    %695 = vset.pattern.permute.xlu0 0
    %696 = vperm.xlu0 %695, %v648
    %v697 = vpop.permute.xlu0 %696
    %700 = vset.pattern.permute.xlu0 0
    %701 = vperm.xlu0 %700, %v649
    %v702 = vpop.permute.xlu0 %701
    %705 = vset.pattern.permute.xlu0 0
    %706 = vperm.xlu0 %705, %v650
    %v707 = vpop.permute.xlu0 %706
    %710 = vset.pattern.permute.xlu0 0
    %711 = vperm.xlu0 %710, %v651
    %v712 = vpop.permute.xlu0 %711
    %715 = vset.pattern.permute.xlu0 0
    %716 = vperm.xlu0 %715, %v652
    %v717 = vpop.permute.xlu0 %716
    %720 = vset.pattern.permute.xlu0 0
    %721 = vperm.xlu0 %720, %v653
    %v722 = vpop.permute.xlu0 %721
    %725 = vset.pattern.permute.xlu0 0
    %726 = vperm.xlu0 %725, %v654
    %v727 = vpop.permute.xlu0 %726
    %730 = vset.pattern.permute.xlu0 0
    %731 = vperm.xlu0 %730, %v655
    %v732 = vpop.permute.xlu0 %731
    %735 = vset.pattern.permute.xlu0 0
    %736 = vperm.xlu0 %735, %v656
    %v737 = vpop.permute.xlu0 %736
    %740 = vset.pattern.permute.xlu0 0
    %741 = vperm.xlu0 %740, %v657
    %v742 = vpop.permute.xlu0 %741
    %745 = vset.pattern.permute.xlu0 0
    %746 = vperm.xlu0 %745, %v658
    %v747 = vpop.permute.xlu0 %746
    %750 = vset.pattern.permute.xlu0 0
    %751 = vperm.xlu0 %750, %v659
    %v752 = vpop.permute.xlu0 %751
    %755 = vset.pattern.permute.xlu0 0
    %756 = vperm.xlu0 %755, %v660
    %v757 = vpop.permute.xlu0 %756
    %762 = vrot.lane.b32.xlu0 %v623, 17
    %v763 = vpop.permute.xlu0 %762
    %764 = vrot.lane.b32.xlu0 %v624, 17
    %v765 = vpop.permute.xlu0 %764
    %766 = vrot.lane.b32.xlu0 %v625, 17
    %v767 = vpop.permute.xlu0 %766
    %v768 = vsel %vm543, %v763, %v765
    %v769 = vsel %vm543, %v765, %v767
    %vm772 = vcmask 64512
    %v774 = vsel %vm772, %v629, 0
    %v777 = vsel %vm772, %v630, 0
    %v780 = vsel %vm772, %v631, 0
    %v783 = vsel %vm772, %v632, 0
    %v786 = vsel %vm772, %v633, 0
    %v789 = vsel %vm772, %v634, 0
    %v792 = vsel %vm772, %v635, 0
    %v795 = vsel %vm772, %v636, 0
    %v798 = vsel %vm772, %v637, 0
    %v801 = vsel %vm772, %v638, 0
    %v804 = vsel %vm772, %v639, 0
    %v807 = vsel %vm772, %v640, 0
    %v810 = vsel %vm772, %v641, 0
    %v813 = vsel %vm772, %v642, 0
    %v816 = vsel %vm772, %v643, 0
    %v819 = vsel %vm772, %v644, 0
    %821 = vmatprep.subr.mxu0 %v769
    %822 = vmatpush1.msra.mxu0 %v768
    %823 = vmatprep.subr.mxu0 0.0
    %824 = vmatpush1.msra.mxu0 0.0
    %825 = vmatprep.subr.mxu0 0.0
    %826 = vmatpush1.msra.mxu0 0.0
    %827 = vmatprep.subr.mxu0 0.0
    %828 = vmatpush1.msra.mxu0 0.0
    %829 = vmatprep.subr.mxu0 0.0
    %830 = vmatpush1.msra.mxu0 0.0
    %831 = vmatprep.subr.mxu0 0.0
    %832 = vmatpush1.msra.mxu0 0.0
    %833 = vmatprep.subr.mxu0 0.0
    %834 = vmatpush1.msra.mxu0 0.0
    %835 = vmatprep.subr.mxu0 0.0
    %836 = vmatpush1.msra.mxu0 0.0
    %837 = vmatprep.subr.mxu0 0.0
    %838 = vmatpush1.msra.mxu0 0.0
    %839 = vmatprep.subr.mxu0 0.0
    %840 = vmatpush1.msra.mxu0 0.0
    %841 = vmatprep.subr.mxu0 0.0
    %842 = vmatpush1.msra.mxu0 0.0
    %843 = vmatprep.subr.mxu0 0.0
    %844 = vmatpush1.msra.mxu0 0.0
    %845 = vmatprep.subr.mxu0 0.0
    %846 = vmatpush1.msra.mxu0 0.0
    %847 = vmatprep.subr.mxu0 0.0
    %848 = vmatpush1.msra.mxu0 0.0
    %849 = vmatprep.subr.mxu0 0.0
    %850 = vmatpush1.msra.mxu0 0.0
    %851 = vmatprep.subr.mxu0 0.0
    %852 = vmatpush1.msra.mxu0 0.0
    %853 = vmatprep.subr.mxu0 0.0
    %854 = vmatpush1.msra.mxu0 0.0
    %855 = vmatprep.subr.mxu0 0.0
    %856 = vmatpush1.msra.mxu0 0.0
    %857 = vmatprep.subr.mxu0 0.0
    %858 = vmatpush1.msra.mxu0 0.0
    %859 = vmatprep.subr.mxu0 0.0
    %860 = vmatpush1.msra.mxu0 0.0
    %861 = vmatprep.subr.mxu0 0.0
    %862 = vmatpush1.msra.mxu0 0.0
    %863 = vmatprep.subr.mxu0 0.0
    %864 = vmatpush1.msra.mxu0 0.0
    %865 = vmatprep.subr.mxu0 0.0
    %866 = vmatpush1.msra.mxu0 0.0
    %867 = vmatprep.subr.mxu0 0.0
    %868 = vmatpush1.msra.mxu0 0.0
    %869 = vmatprep.subr.mxu0 0.0
    %870 = vmatpush1.msra.mxu0 0.0
    %871 = vmatprep.subr.mxu0 0.0
    %872 = vmatpush1.msra.mxu0 0.0
    %873 = vmatprep.subr.mxu0 0.0
    %874 = vmatpush1.msra.mxu0 0.0
    %875 = vmatprep.subr.mxu0 0.0
    %876 = vmatpush1.msra.mxu0 0.0
    %877 = vmatprep.subr.mxu0 0.0
    %878 = vmatpush1.msra.mxu0 0.0
    %879 = vmatprep.subr.mxu0 0.0
    %880 = vmatpush1.msra.mxu0 0.0
    %881 = vmatprep.subr.mxu0 0.0
    %882 = vmatpush1.msra.mxu0 0.0
    %883 = vmatprep.subr.mxu0 0.0
    %884 = vmatpush1.msra.mxu0 0.0
    %885 = vmatprep.mubr.f32.mxu0 0.0
    %886 = vmatmul.mubr.f32.gmra.mrb[0].mxu0 %v774
    %v887 = vpop.f32.mrb[0].mxu0
    %v888 = vadd.f32 %v682, %v887
    %v889 = vpop.f32.mrb[0].mxu0
    %v890 = vadd.f32 %v682, %v889
    %891 = vmatprep.mubr.f32.mxu0 0.0
    %892 = vmatmul.mubr.f32.gmra.mrb[0].mxu0 %v777
    %v893 = vpop.f32.mrb[0].mxu0
    %v894 = vadd.f32 %v687, %v893
    %v895 = vpop.f32.mrb[0].mxu0
    %v896 = vadd.f32 %v687, %v895
    %897 = vmatprep.mubr.f32.mxu0 0.0
    %898 = vmatmul.mubr.f32.gmra.mrb[0].mxu0 %v780
    %v899 = vpop.f32.mrb[0].mxu0
    %v900 = vadd.f32 %v692, %v899
    %v901 = vpop.f32.mrb[0].mxu0
    %v902 = vadd.f32 %v692, %v901
    %903 = vmatprep.mubr.f32.mxu0 0.0
    %904 = vmatmul.mubr.f32.gmra.mrb[0].mxu0 %v783
    %v905 = vpop.f32.mrb[0].mxu0
    %v906 = vadd.f32 %v697, %v905
    %v907 = vpop.f32.mrb[0].mxu0
    %v908 = vadd.f32 %v697, %v907
    %909 = vmatprep.mubr.f32.mxu0 0.0
    %910 = vmatmul.mubr.f32.gmra.mrb[0].mxu0 %v786
    %v911 = vpop.f32.mrb[0].mxu0
    %v912 = vadd.f32 %v702, %v911
    %v913 = vpop.f32.mrb[0].mxu0
    %v914 = vadd.f32 %v702, %v913
    %915 = vmatprep.mubr.f32.mxu0 0.0
    %916 = vmatmul.mubr.f32.gmra.mrb[0].mxu0 %v789
    %v917 = vpop.f32.mrb[0].mxu0
    %v918 = vadd.f32 %v707, %v917
    %v919 = vpop.f32.mrb[0].mxu0
    %v920 = vadd.f32 %v707, %v919
    %921 = vmatprep.mubr.f32.mxu0 0.0
    %922 = vmatmul.mubr.f32.gmra.mrb[0].mxu0 %v792
    %v923 = vpop.f32.mrb[0].mxu0
    %v924 = vadd.f32 %v712, %v923
    %v925 = vpop.f32.mrb[0].mxu0
    %v926 = vadd.f32 %v712, %v925
    %927 = vmatprep.mubr.f32.mxu0 0.0
    %928 = vmatmul.mubr.f32.gmra.mrb[0].mxu0 %v795
    %v929 = vpop.f32.mrb[0].mxu0
    %v930 = vadd.f32 %v717, %v929
    %v931 = vpop.f32.mrb[0].mxu0
    %v932 = vadd.f32 %v717, %v931
    %933 = vmatprep.mubr.f32.mxu0 0.0
    %934 = vmatmul.mubr.f32.gmra.mrb[0].mxu0 %v798
    %v935 = vpop.f32.mrb[0].mxu0
    %v936 = vadd.f32 %v722, %v935
    %v937 = vpop.f32.mrb[0].mxu0
    %v938 = vadd.f32 %v722, %v937
    %939 = vmatprep.mubr.f32.mxu0 0.0
    %940 = vmatmul.mubr.f32.gmra.mrb[0].mxu0 %v801
    %v941 = vpop.f32.mrb[0].mxu0
    %v942 = vadd.f32 %v727, %v941
    %v943 = vpop.f32.mrb[0].mxu0
    %v944 = vadd.f32 %v727, %v943
    %945 = vmatprep.mubr.f32.mxu0 0.0
    %946 = vmatmul.mubr.f32.gmra.mrb[0].mxu0 %v804
    %v947 = vpop.f32.mrb[0].mxu0
    %v948 = vadd.f32 %v732, %v947
    %v949 = vpop.f32.mrb[0].mxu0
    %v950 = vadd.f32 %v732, %v949
    %951 = vmatprep.mubr.f32.mxu0 0.0
    %952 = vmatmul.mubr.f32.gmra.mrb[0].mxu0 %v807
    %v953 = vpop.f32.mrb[0].mxu0
    %v954 = vadd.f32 %v737, %v953
    %v955 = vpop.f32.mrb[0].mxu0
    %v956 = vadd.f32 %v737, %v955
    %957 = vmatprep.mubr.f32.mxu0 0.0
    %958 = vmatmul.mubr.f32.gmra.mrb[0].mxu0 %v810
    %v959 = vpop.f32.mrb[0].mxu0
    %v960 = vadd.f32 %v742, %v959
    %v961 = vpop.f32.mrb[0].mxu0
    %v962 = vadd.f32 %v742, %v961
    %963 = vmatprep.mubr.f32.mxu0 0.0
    %964 = vmatmul.mubr.f32.gmra.mrb[0].mxu0 %v813
    %v965 = vpop.f32.mrb[0].mxu0
    %v966 = vadd.f32 %v747, %v965
    %v967 = vpop.f32.mrb[0].mxu0
    %v968 = vadd.f32 %v747, %v967
    %969 = vmatprep.mubr.f32.mxu0 0.0
    %970 = vmatmul.mubr.f32.gmra.mrb[0].mxu0 %v816
    %v971 = vpop.f32.mrb[0].mxu0
    %v972 = vadd.f32 %v752, %v971
    %v973 = vpop.f32.mrb[0].mxu0
    %v974 = vadd.f32 %v752, %v973
    %975 = vmatprep.mubr.f32.mxu0 0.0
    %976 = vmatmul.mubr.f32.gmra.mrb[0].mxu0 %v819
    %v977 = vpop.f32.mrb[0].mxu0
    %v978 = vadd.f32 %v757, %v977
    %v979 = vpop.f32.mrb[0].mxu0
    %v980 = vadd.f32 %v757, %v979
    %981 = vdwg.mxu0
    %v982 = vmax.f32 %v888, 0.0
    %v983 = vmax.f32 %v890, 0.0
    %v984 = vmax.f32 %v894, 0.0
    %v985 = vmax.f32 %v896, 0.0
    %v986 = vmax.f32 %v900, 0.0
    %v987 = vmax.f32 %v902, 0.0
    %v988 = vmax.f32 %v906, 0.0
    %v989 = vmax.f32 %v908, 0.0
    %v990 = vmax.f32 %v912, 0.0
    %v991 = vmax.f32 %v914, 0.0
    %v992 = vmax.f32 %v918, 0.0
    %v993 = vmax.f32 %v920, 0.0
    %v994 = vmax.f32 %v924, 0.0
    %v995 = vmax.f32 %v926, 0.0
    %v996 = vmax.f32 %v930, 0.0
    %v997 = vmax.f32 %v932, 0.0
    %v998 = vmax.f32 %v936, 0.0
    %v999 = vmax.f32 %v938, 0.0
    %v1000 = vmax.f32 %v942, 0.0
    %v1001 = vmax.f32 %v944, 0.0
    %v1002 = vmax.f32 %v948, 0.0
    %v1003 = vmax.f32 %v950, 0.0
    %v1004 = vmax.f32 %v954, 0.0
    %v1005 = vmax.f32 %v956, 0.0
    %v1006 = vmax.f32 %v960, 0.0
    %v1007 = vmax.f32 %v962, 0.0
    %v1008 = vmax.f32 %v966, 0.0
    %v1009 = vmax.f32 %v968, 0.0
    %v1010 = vmax.f32 %v972, 0.0
    %v1011 = vmax.f32 %v974, 0.0
    %v1012 = vmax.f32 %v978, 0.0
    %v1013 = vmax.f32 %v980, 0.0
    %1014 = vmatprep.subr.mxu0 %v983
    %1015 = vmatpush1.xpose.msra.mxu0 %v982
    %1016 = vmatprep.subr.mxu0 %v985
    %1017 = vmatpush1.xpose.msra.mxu0 %v984
    %1018 = vmatprep.subr.mxu0 %v987
    %1019 = vmatpush1.xpose.msra.mxu0 %v986
    %1020 = vmatprep.subr.mxu0 %v989
    %1021 = vmatpush1.xpose.msra.mxu0 %v988
    %1022 = vmatprep.subr.mxu0 %v991
    %1023 = vmatpush1.xpose.msra.mxu0 %v990
    %1024 = vmatprep.subr.mxu0 %v993
    %1025 = vmatpush1.xpose.msra.mxu0 %v992
    %1026 = vmatprep.subr.mxu0 %v995
    %1027 = vmatpush1.xpose.msra.mxu0 %v994
    %1028 = vmatprep.subr.mxu0 %v997
    %1029 = vmatpush1.xpose.msra.mxu0 %v996
    %1030 = vmatprep.subr.mxu0 %v999
    %1031 = vmatpush1.xpose.msra.mxu0 %v998
    %1032 = vmatprep.subr.mxu0 %v1001
    %1033 = vmatpush1.xpose.msra.mxu0 %v1000
    %1034 = vmatprep.subr.mxu0 %v1003
    %1035 = vmatpush1.xpose.msra.mxu0 %v1002
    %1036 = vmatprep.subr.mxu0 %v1005
    %1037 = vmatpush1.xpose.msra.mxu0 %v1004
    %1038 = vmatprep.subr.mxu0 %v1007
    %1039 = vmatpush1.xpose.msra.mxu0 %v1006
    %1040 = vmatprep.subr.mxu0 %v1009
    %1041 = vmatpush1.xpose.msra.mxu0 %v1008
    %1042 = vmatprep.subr.mxu0 %v1011
    %1043 = vmatpush1.xpose.msra.mxu0 %v1010
    %1044 = vmatprep.subr.mxu0 %v1013
    %1045 = vmatpush1.xpose.msra.mxu0 %v1012
    %1046 = vmatprep.subr.mxu0 0.0
    %1047 = vmatpush1.xpose.msra.mxu0 0.0
    %1048 = vmatprep.subr.mxu0 0.0
    %1049 = vmatpush1.xpose.msra.mxu0 0.0
    %1050 = vmatprep.subr.mxu0 0.0
    %1051 = vmatpush1.xpose.msra.mxu0 0.0
    %1052 = vmatprep.subr.mxu0 0.0
    %1053 = vmatpush1.xpose.msra.mxu0 0.0
    %1054 = vmatprep.subr.mxu0 0.0
    %1055 = vmatpush1.xpose.msra.mxu0 0.0
    %1056 = vmatprep.subr.mxu0 0.0
    %1057 = vmatpush1.xpose.msra.mxu0 0.0
    %1058 = vmatprep.subr.mxu0 0.0
    %1059 = vmatpush1.xpose.msra.mxu0 0.0
    %1060 = vmatprep.subr.mxu0 0.0
    %1061 = vmatpush1.xpose.msra.mxu0 0.0
    %1062 = vmatprep.subr.mxu0 0.0
    %1063 = vmatpush1.xpose.msra.mxu0 0.0
    %1064 = vmatprep.subr.mxu0 0.0
    %1065 = vmatpush1.xpose.msra.mxu0 0.0
    %1066 = vmatprep.subr.mxu0 0.0
    %1067 = vmatpush1.xpose.msra.mxu0 0.0
    %1068 = vmatprep.subr.mxu0 0.0
    %1069 = vmatpush1.xpose.msra.mxu0 0.0
    %1070 = vmatprep.subr.mxu0 0.0
    %1071 = vmatpush1.xpose.msra.mxu0 0.0
    %1072 = vmatprep.subr.mxu0 0.0
    %1073 = vmatpush1.xpose.msra.mxu0 0.0
    %1074 = vmatprep.subr.mxu0 0.0
    %1075 = vmatpush1.xpose.msra.mxu0 0.0
    %1076 = vmatprep.subr.mxu0 0.0
    %1077 = vmatpush1.xpose.msra.mxu0 0.0
    %1078 = vmatprep.mubr.f32.mxu0 1.0
    %1079 = vmatmul.mubr.f32.gmra.mrb[0].mxu0 1.0
    %v1080 = vpop.f32.mrb[0].mxu0
    %v1081 = vadd.f32 0.0, %v1080
    %v1082 = vpop.f32.mrb[0].mxu0
    %1083 = vdwg.mxu0
    %v1084 = vmul.f32 %v1081, 0.00390625
    %1085 = vmatprep.subr.mxu0 0.0
    %1086 = vmatpush1.msra.mxu0 %v661
    %1087 = vmatprep.subr.mxu0 0.0
    %1088 = vmatpush1.msra.mxu0 %v662
    %1089 = vmatprep.subr.mxu0 0.0
    %1090 = vmatpush1.msra.mxu0 %v663
    %1091 = vmatprep.subr.mxu0 0.0
    %1092 = vmatpush1.msra.mxu0 %v664
    %1093 = vmatprep.subr.mxu0 0.0
    %1094 = vmatpush1.msra.mxu0 %v665
    %1095 = vmatprep.subr.mxu0 0.0
    %1096 = vmatpush1.msra.mxu0 %v666
    %1097 = vmatprep.subr.mxu0 0.0
    %1098 = vmatpush1.msra.mxu0 %v667
    %1099 = vmatprep.subr.mxu0 0.0
    %1100 = vmatpush1.msra.mxu0 %v668
    %1101 = vmatprep.subr.mxu0 0.0
    %1102 = vmatpush1.msra.mxu0 %v669
    %1103 = vmatprep.subr.mxu0 0.0
    %1104 = vmatpush1.msra.mxu0 %v670
    %1105 = vmatprep.subr.mxu0 0.0
    %1106 = vmatpush1.msra.mxu0 %v671
    %1107 = vmatprep.subr.mxu0 0.0
    %1108 = vmatpush1.msra.mxu0 %v672
    %1109 = vmatprep.subr.mxu0 0.0
    %1110 = vmatpush1.msra.mxu0 %v673
    %1111 = vmatprep.subr.mxu0 0.0
    %1112 = vmatpush1.msra.mxu0 %v674
    %1113 = vmatprep.subr.mxu0 0.0
    %1114 = vmatpush1.msra.mxu0 %v675
    %1115 = vmatprep.subr.mxu0 0.0
    %1116 = vmatpush1.msra.mxu0 %v676
    %1117 = vmatprep.subr.mxu0 0.0
    %1118 = vmatpush1.msra.mxu0 0.0
    %1119 = vmatprep.subr.mxu0 0.0
    %1120 = vmatpush1.msra.mxu0 0.0
    %1121 = vmatprep.subr.mxu0 0.0
    %1122 = vmatpush1.msra.mxu0 0.0
    %1123 = vmatprep.subr.mxu0 0.0
    %1124 = vmatpush1.msra.mxu0 0.0
    %1125 = vmatprep.subr.mxu0 0.0
    %1126 = vmatpush1.msra.mxu0 0.0
    %1127 = vmatprep.subr.mxu0 0.0
    %1128 = vmatpush1.msra.mxu0 0.0
    %1129 = vmatprep.subr.mxu0 0.0
    %1130 = vmatpush1.msra.mxu0 0.0
    %1131 = vmatprep.subr.mxu0 0.0
    %1132 = vmatpush1.msra.mxu0 0.0
    %1133 = vmatprep.subr.mxu0 0.0
    %1134 = vmatpush1.msra.mxu0 0.0
    %1135 = vmatprep.subr.mxu0 0.0
    %1136 = vmatpush1.msra.mxu0 0.0
    %1137 = vmatprep.subr.mxu0 0.0
    %1138 = vmatpush1.msra.mxu0 0.0
    %1139 = vmatprep.subr.mxu0 0.0
    %1140 = vmatpush1.msra.mxu0 0.0
    %1141 = vmatprep.subr.mxu0 0.0
    %1142 = vmatpush1.msra.mxu0 0.0
    %1143 = vmatprep.subr.mxu0 0.0
    %1144 = vmatpush1.msra.mxu0 0.0
    %1145 = vmatprep.subr.mxu0 0.0
    %1146 = vmatpush1.msra.mxu0 0.0
    %1147 = vmatprep.subr.mxu0 0.0
    %1148 = vmatpush1.msra.mxu0 0.0
    %1149 = vmatprep.mubr.f32.mxu0 0.0
    %1150 = vmatmul.mubr.f32.gmra.mrb[0].mxu0 %v1084
    %v1151 = vpop.f32.mrb[0].mxu0
    %v1152 = vadd.f32 %v677, %v1151
    %v1153 = vpop.f32.mrb[0].mxu0
    %1154 = vdwg.mxu0
    %v1155 = vsub.f32 1.0, %v678
    %v1156 = vmul.f32 %v1155, 1e+30
    %v1157 = vsub.f32 %v1152, %v1156
    %vm1158 = vcmask 1040384
    %v1159 = vsel %vm1158, %v1157, -inf
    %1160 = vmax.xlane.f32.xlu0 %v1159
    %v1161 = vpop.xlane.xlu0 %1160
    %v1162 = vsub.f32 %v1157, %v1161
    %v1163 = vmul.f32 %v1162, 1.442695
    %v1164 = vpow.pop %v1163
    %v1165 = vsel %vm1158, %v1164, 0.0
    %1166 = vadd.xlane.f32.xlu0 %v1165
    %v1167 = vpop.xlane.xlu0 %1166
    %v1168 = vrcp.pop %v1167
    %v1169 = vmul.f32 %v1164, %v1168
    %1170 = vst [vmem:[#allocation7] sm:$0x1] %v1084
    %1171 = vst [vmem:[#allocation5] sm:$0x1] %v1152
    %1172 = vst [vmem:[#allocation3] sm:$0x1] %v1169
    %1176 = vrot.lane.b32.xlu0 %v626, 17
    %v1177 = vpop.permute.xlu0 %1176
    %1178 = vrot.lane.b32.xlu0 %v627, 17
    %v1179 = vpop.permute.xlu0 %1178
    %1180 = vrot.lane.b32.xlu0 %v628, 17
    %v1181 = vpop.permute.xlu0 %1180
    %v1182 = vsel %vm543, %v1177, %v1179
    %v1183 = vsel %vm543, %v1179, %v1181
    %1186 = vmatprep.subr.mxu0 %v1183
    %1187 = vmatpush1.msra.mxu0 %v1182
    %1188 = vmatprep.subr.mxu0 0.0
    %1189 = vmatpush1.msra.mxu0 0.0
    %1190 = vmatprep.subr.mxu0 0.0
    %1191 = vmatpush1.msra.mxu0 0.0
    %1192 = vmatprep.subr.mxu0 0.0
    %1193 = vmatpush1.msra.mxu0 0.0
    %1194 = vmatprep.subr.mxu0 0.0
    %1195 = vmatpush1.msra.mxu0 0.0
    %1196 = vmatprep.subr.mxu0 0.0
    %1197 = vmatpush1.msra.mxu0 0.0
    %1198 = vmatprep.subr.mxu0 0.0
    %1199 = vmatpush1.msra.mxu0 0.0
    %1200 = vmatprep.subr.mxu0 0.0
    %1201 = vmatpush1.msra.mxu0 0.0
    %1202 = vmatprep.subr.mxu0 0.0
    %1203 = vmatpush1.msra.mxu0 0.0
    %1204 = vmatprep.subr.mxu0 0.0
    %1205 = vmatpush1.msra.mxu0 0.0
    %1206 = vmatprep.subr.mxu0 0.0
    %1207 = vmatpush1.msra.mxu0 0.0
    %1208 = vmatprep.subr.mxu0 0.0
    %1209 = vmatpush1.msra.mxu0 0.0
    %1210 = vmatprep.subr.mxu0 0.0
    %1211 = vmatpush1.msra.mxu0 0.0
    %1212 = vmatprep.subr.mxu0 0.0
    %1213 = vmatpush1.msra.mxu0 0.0
    %1214 = vmatprep.subr.mxu0 0.0
    %1215 = vmatpush1.msra.mxu0 0.0
    %1216 = vmatprep.subr.mxu0 0.0
    %1217 = vmatpush1.msra.mxu0 0.0
    %1218 = vmatprep.subr.mxu0 0.0
    %1219 = vmatpush1.msra.mxu0 0.0
    %1220 = vmatprep.subr.mxu0 0.0
    %1221 = vmatpush1.msra.mxu0 0.0
    %1222 = vmatprep.subr.mxu0 0.0
    %1223 = vmatpush1.msra.mxu0 0.0
    %1224 = vmatprep.subr.mxu0 0.0
    %1225 = vmatpush1.msra.mxu0 0.0
    %1226 = vmatprep.subr.mxu0 0.0
    %1227 = vmatpush1.msra.mxu0 0.0
    %1228 = vmatprep.subr.mxu0 0.0
    %1229 = vmatpush1.msra.mxu0 0.0
    %1230 = vmatprep.subr.mxu0 0.0
    %1231 = vmatpush1.msra.mxu0 0.0
    %1232 = vmatprep.subr.mxu0 0.0
    %1233 = vmatpush1.msra.mxu0 0.0
    %1234 = vmatprep.subr.mxu0 0.0
    %1235 = vmatpush1.msra.mxu0 0.0
    %1236 = vmatprep.subr.mxu0 0.0
    %1237 = vmatpush1.msra.mxu0 0.0
    %1238 = vmatprep.subr.mxu0 0.0
    %1239 = vmatpush1.msra.mxu0 0.0
    %1240 = vmatprep.subr.mxu0 0.0
    %1241 = vmatpush1.msra.mxu0 0.0
    %1242 = vmatprep.subr.mxu0 0.0
    %1243 = vmatpush1.msra.mxu0 0.0
    %1244 = vmatprep.subr.mxu0 0.0
    %1245 = vmatpush1.msra.mxu0 0.0
    %1246 = vmatprep.subr.mxu0 0.0
    %1247 = vmatpush1.msra.mxu0 0.0
    %1248 = vmatprep.subr.mxu0 0.0
    %1249 = vmatpush1.msra.mxu0 0.0
    %1250 = vmatprep.mubr.f32.mxu0 0.0
    %1251 = vmatmul.mubr.f32.gmra.mrb[0].mxu0 %v774
    %v1252 = vpop.f32.mrb[0].mxu0
    %v1253 = vadd.f32 %v682, %v1252
    %v1254 = vpop.f32.mrb[0].mxu0
    %v1255 = vadd.f32 %v682, %v1254
    %1256 = vmatprep.mubr.f32.mxu0 0.0
    %1257 = vmatmul.mubr.f32.gmra.mrb[0].mxu0 %v777
    %v1258 = vpop.f32.mrb[0].mxu0
    %v1259 = vadd.f32 %v687, %v1258
    %v1260 = vpop.f32.mrb[0].mxu0
    %v1261 = vadd.f32 %v687, %v1260
    %1262 = vmatprep.mubr.f32.mxu0 0.0
    %1263 = vmatmul.mubr.f32.gmra.mrb[0].mxu0 %v780
    %v1264 = vpop.f32.mrb[0].mxu0
    %v1265 = vadd.f32 %v692, %v1264
    %v1266 = vpop.f32.mrb[0].mxu0
    %v1267 = vadd.f32 %v692, %v1266
    %1268 = vmatprep.mubr.f32.mxu0 0.0
    %1269 = vmatmul.mubr.f32.gmra.mrb[0].mxu0 %v783
    %v1270 = vpop.f32.mrb[0].mxu0
    %v1271 = vadd.f32 %v697, %v1270
    %v1272 = vpop.f32.mrb[0].mxu0
    %v1273 = vadd.f32 %v697, %v1272
    %1274 = vmatprep.mubr.f32.mxu0 0.0
    %1275 = vmatmul.mubr.f32.gmra.mrb[0].mxu0 %v786
    %v1276 = vpop.f32.mrb[0].mxu0
    %v1277 = vadd.f32 %v702, %v1276
    %v1278 = vpop.f32.mrb[0].mxu0
    %v1279 = vadd.f32 %v702, %v1278
    %1280 = vmatprep.mubr.f32.mxu0 0.0
    %1281 = vmatmul.mubr.f32.gmra.mrb[0].mxu0 %v789
    %v1282 = vpop.f32.mrb[0].mxu0
    %v1283 = vadd.f32 %v707, %v1282
    %v1284 = vpop.f32.mrb[0].mxu0
    %v1285 = vadd.f32 %v707, %v1284
    %1286 = vmatprep.mubr.f32.mxu0 0.0
    %1287 = vmatmul.mubr.f32.gmra.mrb[0].mxu0 %v792
    %v1288 = vpop.f32.mrb[0].mxu0
    %v1289 = vadd.f32 %v712, %v1288
    %v1290 = vpop.f32.mrb[0].mxu0
    %v1291 = vadd.f32 %v712, %v1290
    %1292 = vmatprep.mubr.f32.mxu0 0.0
    %1293 = vmatmul.mubr.f32.gmra.mrb[0].mxu0 %v795
    %v1294 = vpop.f32.mrb[0].mxu0
    %v1295 = vadd.f32 %v717, %v1294
    %v1296 = vpop.f32.mrb[0].mxu0
    %v1297 = vadd.f32 %v717, %v1296
    %1298 = vmatprep.mubr.f32.mxu0 0.0
    %1299 = vmatmul.mubr.f32.gmra.mrb[0].mxu0 %v798
    %v1300 = vpop.f32.mrb[0].mxu0
    %v1301 = vadd.f32 %v722, %v1300
    %v1302 = vpop.f32.mrb[0].mxu0
    %v1303 = vadd.f32 %v722, %v1302
    %1304 = vmatprep.mubr.f32.mxu0 0.0
    %1305 = vmatmul.mubr.f32.gmra.mrb[0].mxu0 %v801
    %v1306 = vpop.f32.mrb[0].mxu0
    %v1307 = vadd.f32 %v727, %v1306
    %v1308 = vpop.f32.mrb[0].mxu0
    %v1309 = vadd.f32 %v727, %v1308
    %1310 = vmatprep.mubr.f32.mxu0 0.0
    %1311 = vmatmul.mubr.f32.gmra.mrb[0].mxu0 %v804
    %v1312 = vpop.f32.mrb[0].mxu0
    %v1313 = vadd.f32 %v732, %v1312
    %v1314 = vpop.f32.mrb[0].mxu0
    %v1315 = vadd.f32 %v732, %v1314
    %1316 = vmatprep.mubr.f32.mxu0 0.0
    %1317 = vmatmul.mubr.f32.gmra.mrb[0].mxu0 %v807
    %v1318 = vpop.f32.mrb[0].mxu0
    %v1319 = vadd.f32 %v737, %v1318
    %v1320 = vpop.f32.mrb[0].mxu0
    %v1321 = vadd.f32 %v737, %v1320
    %1322 = vmatprep.mubr.f32.mxu0 0.0
    %1323 = vmatmul.mubr.f32.gmra.mrb[0].mxu0 %v810
    %v1324 = vpop.f32.mrb[0].mxu0
    %v1325 = vadd.f32 %v742, %v1324
    %v1326 = vpop.f32.mrb[0].mxu0
    %v1327 = vadd.f32 %v742, %v1326
    %1328 = vmatprep.mubr.f32.mxu0 0.0
    %1329 = vmatmul.mubr.f32.gmra.mrb[0].mxu0 %v813
    %v1330 = vpop.f32.mrb[0].mxu0
    %v1331 = vadd.f32 %v747, %v1330
    %v1332 = vpop.f32.mrb[0].mxu0
    %v1333 = vadd.f32 %v747, %v1332
    %1334 = vmatprep.mubr.f32.mxu0 0.0
    %1335 = vmatmul.mubr.f32.gmra.mrb[0].mxu0 %v816
    %v1336 = vpop.f32.mrb[0].mxu0
    %v1337 = vadd.f32 %v752, %v1336
    %v1338 = vpop.f32.mrb[0].mxu0
    %v1339 = vadd.f32 %v752, %v1338
    %1340 = vmatprep.mubr.f32.mxu0 0.0
    %1341 = vmatmul.mubr.f32.gmra.mrb[0].mxu0 %v819
    %v1342 = vpop.f32.mrb[0].mxu0
    %v1343 = vadd.f32 %v757, %v1342
    %v1344 = vpop.f32.mrb[0].mxu0
    %v1345 = vadd.f32 %v757, %v1344
    %1346 = vdwg.mxu0
    %v1347 = vmax.f32 %v1253, 0.0
    %v1348 = vmax.f32 %v1255, 0.0
    %v1349 = vmax.f32 %v1259, 0.0
    %v1350 = vmax.f32 %v1261, 0.0
    %v1351 = vmax.f32 %v1265, 0.0
    %v1352 = vmax.f32 %v1267, 0.0
    %v1353 = vmax.f32 %v1271, 0.0
    %v1354 = vmax.f32 %v1273, 0.0
    %v1355 = vmax.f32 %v1277, 0.0
    %v1356 = vmax.f32 %v1279, 0.0
    %v1357 = vmax.f32 %v1283, 0.0
    %v1358 = vmax.f32 %v1285, 0.0
    %v1359 = vmax.f32 %v1289, 0.0
    %v1360 = vmax.f32 %v1291, 0.0
    %v1361 = vmax.f32 %v1295, 0.0
    %v1362 = vmax.f32 %v1297, 0.0
    %v1363 = vmax.f32 %v1301, 0.0
    %v1364 = vmax.f32 %v1303, 0.0
    %v1365 = vmax.f32 %v1307, 0.0
    %v1366 = vmax.f32 %v1309, 0.0
    %v1367 = vmax.f32 %v1313, 0.0
    %v1368 = vmax.f32 %v1315, 0.0
    %v1369 = vmax.f32 %v1319, 0.0
    %v1370 = vmax.f32 %v1321, 0.0
    %v1371 = vmax.f32 %v1325, 0.0
    %v1372 = vmax.f32 %v1327, 0.0
    %v1373 = vmax.f32 %v1331, 0.0
    %v1374 = vmax.f32 %v1333, 0.0
    %v1375 = vmax.f32 %v1337, 0.0
    %v1376 = vmax.f32 %v1339, 0.0
    %v1377 = vmax.f32 %v1343, 0.0
    %v1378 = vmax.f32 %v1345, 0.0
    %1379 = vmatprep.subr.mxu0 %v1348
    %1380 = vmatpush1.xpose.msra.mxu0 %v1347
    %1381 = vmatprep.subr.mxu0 %v1350
    %1382 = vmatpush1.xpose.msra.mxu0 %v1349
    %1383 = vmatprep.subr.mxu0 %v1352
    %1384 = vmatpush1.xpose.msra.mxu0 %v1351
    %1385 = vmatprep.subr.mxu0 %v1354
    %1386 = vmatpush1.xpose.msra.mxu0 %v1353
    %1387 = vmatprep.subr.mxu0 %v1356
    %1388 = vmatpush1.xpose.msra.mxu0 %v1355
    %1389 = vmatprep.subr.mxu0 %v1358
    %1390 = vmatpush1.xpose.msra.mxu0 %v1357
    %1391 = vmatprep.subr.mxu0 %v1360
    %1392 = vmatpush1.xpose.msra.mxu0 %v1359
    %1393 = vmatprep.subr.mxu0 %v1362
    %1394 = vmatpush1.xpose.msra.mxu0 %v1361
    %1395 = vmatprep.subr.mxu0 %v1364
    %1396 = vmatpush1.xpose.msra.mxu0 %v1363
    %1397 = vmatprep.subr.mxu0 %v1366
    %1398 = vmatpush1.xpose.msra.mxu0 %v1365
    %1399 = vmatprep.subr.mxu0 %v1368
    %1400 = vmatpush1.xpose.msra.mxu0 %v1367
    %1401 = vmatprep.subr.mxu0 %v1370
    %1402 = vmatpush1.xpose.msra.mxu0 %v1369
    %1403 = vmatprep.subr.mxu0 %v1372
    %1404 = vmatpush1.xpose.msra.mxu0 %v1371
    %1405 = vmatprep.subr.mxu0 %v1374
    %1406 = vmatpush1.xpose.msra.mxu0 %v1373
    %1407 = vmatprep.subr.mxu0 %v1376
    %1408 = vmatpush1.xpose.msra.mxu0 %v1375
    %1409 = vmatprep.subr.mxu0 %v1378
    %1410 = vmatpush1.xpose.msra.mxu0 %v1377
    %1411 = vmatprep.subr.mxu0 0.0
    %1412 = vmatpush1.xpose.msra.mxu0 0.0
    %1413 = vmatprep.subr.mxu0 0.0
    %1414 = vmatpush1.xpose.msra.mxu0 0.0
    %1415 = vmatprep.subr.mxu0 0.0
    %1416 = vmatpush1.xpose.msra.mxu0 0.0
    %1417 = vmatprep.subr.mxu0 0.0
    %1418 = vmatpush1.xpose.msra.mxu0 0.0
    %1419 = vmatprep.subr.mxu0 0.0
    %1420 = vmatpush1.xpose.msra.mxu0 0.0
    %1421 = vmatprep.subr.mxu0 0.0
    %1422 = vmatpush1.xpose.msra.mxu0 0.0
    %1423 = vmatprep.subr.mxu0 0.0
    %1424 = vmatpush1.xpose.msra.mxu0 0.0
    %1425 = vmatprep.subr.mxu0 0.0
    %1426 = vmatpush1.xpose.msra.mxu0 0.0
    %1427 = vmatprep.subr.mxu0 0.0
    %1428 = vmatpush1.xpose.msra.mxu0 0.0
    %1429 = vmatprep.subr.mxu0 0.0
    %1430 = vmatpush1.xpose.msra.mxu0 0.0
    %1431 = vmatprep.subr.mxu0 0.0
    %1432 = vmatpush1.xpose.msra.mxu0 0.0
    %1433 = vmatprep.subr.mxu0 0.0
    %1434 = vmatpush1.xpose.msra.mxu0 0.0
    %1435 = vmatprep.subr.mxu0 0.0
    %1436 = vmatpush1.xpose.msra.mxu0 0.0
    %1437 = vmatprep.subr.mxu0 0.0
    %1438 = vmatpush1.xpose.msra.mxu0 0.0
    %1439 = vmatprep.subr.mxu0 0.0
    %1440 = vmatpush1.xpose.msra.mxu0 0.0
    %1441 = vmatprep.subr.mxu0 0.0
    %1442 = vmatpush1.xpose.msra.mxu0 0.0
    %1443 = vmatprep.mubr.f32.mxu0 1.0
    %1444 = vmatmul.mubr.f32.gmra.mrb[0].mxu0 1.0
    %v1445 = vpop.f32.mrb[0].mxu0
    %v1446 = vadd.f32 0.0, %v1445
    %v1447 = vpop.f32.mrb[0].mxu0
    %1448 = vdwg.mxu0
    %v1449 = vmul.f32 %v1446, 0.00390625
    %1450 = vmatprep.subr.mxu0 0.0
    %1451 = vmatpush1.msra.mxu0 %v661
    %1452 = vmatprep.subr.mxu0 0.0
    %1453 = vmatpush1.msra.mxu0 %v662
    %1454 = vmatprep.subr.mxu0 0.0
    %1455 = vmatpush1.msra.mxu0 %v663
    %1456 = vmatprep.subr.mxu0 0.0
    %1457 = vmatpush1.msra.mxu0 %v664
    %1458 = vmatprep.subr.mxu0 0.0
    %1459 = vmatpush1.msra.mxu0 %v665
    %1460 = vmatprep.subr.mxu0 0.0
    %1461 = vmatpush1.msra.mxu0 %v666
    %1462 = vmatprep.subr.mxu0 0.0
    %1463 = vmatpush1.msra.mxu0 %v667
    %1464 = vmatprep.subr.mxu0 0.0
    %1465 = vmatpush1.msra.mxu0 %v668
    %1466 = vmatprep.subr.mxu0 0.0
    %1467 = vmatpush1.msra.mxu0 %v669
    %1468 = vmatprep.subr.mxu0 0.0
    %1469 = vmatpush1.msra.mxu0 %v670
    %1470 = vmatprep.subr.mxu0 0.0
    %1471 = vmatpush1.msra.mxu0 %v671
    %1472 = vmatprep.subr.mxu0 0.0
    %1473 = vmatpush1.msra.mxu0 %v672
    %1474 = vmatprep.subr.mxu0 0.0
    %1475 = vmatpush1.msra.mxu0 %v673
    %1476 = vmatprep.subr.mxu0 0.0
    %1477 = vmatpush1.msra.mxu0 %v674
    %1478 = vmatprep.subr.mxu0 0.0
    %1479 = vmatpush1.msra.mxu0 %v675
    %1480 = vmatprep.subr.mxu0 0.0
    %1481 = vmatpush1.msra.mxu0 %v676
    %1482 = vmatprep.subr.mxu0 0.0
    %1483 = vmatpush1.msra.mxu0 0.0
    %1484 = vmatprep.subr.mxu0 0.0
    %1485 = vmatpush1.msra.mxu0 0.0
    %1486 = vmatprep.subr.mxu0 0.0
    %1487 = vmatpush1.msra.mxu0 0.0
    %1488 = vmatprep.subr.mxu0 0.0
    %1489 = vmatpush1.msra.mxu0 0.0
    %1490 = vmatprep.subr.mxu0 0.0
    %1491 = vmatpush1.msra.mxu0 0.0
    %1492 = vmatprep.subr.mxu0 0.0
    %1493 = vmatpush1.msra.mxu0 0.0
    %1494 = vmatprep.subr.mxu0 0.0
    %1495 = vmatpush1.msra.mxu0 0.0
    %1496 = vmatprep.subr.mxu0 0.0
    %1497 = vmatpush1.msra.mxu0 0.0
    %1498 = vmatprep.subr.mxu0 0.0
    %1499 = vmatpush1.msra.mxu0 0.0
    %1500 = vmatprep.subr.mxu0 0.0
    %1501 = vmatpush1.msra.mxu0 0.0
    %1502 = vmatprep.subr.mxu0 0.0
    %1503 = vmatpush1.msra.mxu0 0.0
    %1504 = vmatprep.subr.mxu0 0.0
    %1505 = vmatpush1.msra.mxu0 0.0
    %1506 = vmatprep.subr.mxu0 0.0
    %1507 = vmatpush1.msra.mxu0 0.0
    %1508 = vmatprep.subr.mxu0 0.0
    %1509 = vmatpush1.msra.mxu0 0.0
    %1510 = vmatprep.subr.mxu0 0.0
    %1511 = vmatpush1.msra.mxu0 0.0
    %1512 = vmatprep.subr.mxu0 0.0
    %1513 = vmatpush1.msra.mxu0 0.0
    %1514 = vmatprep.mubr.f32.mxu0 0.0
    %1515 = vmatmul.mubr.f32.gmra.mrb[0].mxu0 %v1449
    %v1516 = vpop.f32.mrb[0].mxu0
    %v1517 = vadd.f32 %v677, %v1516
    %v1518 = vpop.f32.mrb[0].mxu0
    %1519 = vdwg.mxu0
    %v1520 = vsub.f32 %v1517, %v1156
    %v1521 = vsel %vm1158, %v1520, -inf
    %1522 = vmax.xlane.f32.xlu0 %v1521
    %v1523 = vpop.xlane.xlu0 %1522
    %v1524 = vsub.f32 %v1520, %v1523
    %v1525 = vmul.f32 %v1524, 1.442695
    %v1526 = vpow.pop %v1525
    %v1527 = vsel %vm1158, %v1526, 0.0
    %1528 = vadd.xlane.f32.xlu0 %v1527
    %v1529 = vpop.xlane.xlu0 %1528
    %v1530 = vrcp.pop %v1529
    %v1531 = vmul.f32 %v1526, %v1530
    %1532 = vst [vmem:[#allocation7 + $0x1] sm:$0x1] %v1449
    %1533 = vst [vmem:[#allocation5 + $0x1] sm:$0x1] %v1517
    %1534 = vst [vmem:[#allocation3 + $0x1] sm:$0x1] %v1531
    // Predicated region
    $region38: #{mobilenet_forward.1} parent=1 // pred_check
      _
    $region39: #{mobilenet_forward.1} parent=1 // pred_check_branch
      %1536 = sbr.rel (0) target = $region41
    $region40: #{mobilenet_forward.1} parent=1 // pred_region
      %s1538 = ssub.s32 32, 32
      %1539 = vsyncadd [#allocation4], %s1538
      %s1541 = sshll.u32 [#allocation3], 4
      %s1542 = int_to_ptr.vmem [resolvable:$true] %s1541
      %1544 = dma.vmem_to_hbm [thread:$0]  %s1542, 32, %s9, [#allocation4]
    $region41: #{mobilenet_forward.1} parent=1 // pred_fallthru
      _
    // Predicated region
    $region42: #{mobilenet_forward.1} parent=1 // pred_check
      _
    $region43: #{mobilenet_forward.1} parent=1 // pred_check_branch
      %1546 = sbr.rel (0) target = $region45
    $region44: #{mobilenet_forward.1} parent=1 // pred_region
      %s1548 = ssub.s32 32, 32
      %1549 = vsyncadd [#allocation6], %s1548
      %s1551 = sshll.u32 [#allocation5], 4
      %s1552 = int_to_ptr.vmem [resolvable:$true] %s1551
      %1554 = dma.vmem_to_hbm [thread:$0]  %s1552, 32, %s10, [#allocation6]
    $region45: #{mobilenet_forward.1} parent=1 // pred_fallthru
      _
    // Predicated region
    $region46: #{mobilenet_forward.1} parent=1 // pred_check
      _
    $region47: #{mobilenet_forward.1} parent=1 // pred_check_branch
      %1556 = sbr.rel (0) target = $region49
    $region48: #{mobilenet_forward.1} parent=1 // pred_region
      %s1558 = ssub.s32 32, 32
      %1559 = vsyncadd [#allocation6], %s1558
      %s1561 = sshll.u32 [#allocation7], 4
      %s1562 = int_to_ptr.vmem [resolvable:$true] %s1561
      %1564 = dma.vmem_to_hbm [thread:$0]  %s1562, 32, %s11, [#allocation6]
    $region49: #{mobilenet_forward.1} parent=1 // pred_fallthru
      _
    // Predicated region
    $region50: #{mobilenet_forward.1} parent=1 // pred_check
      _
    $region51: #{mobilenet_forward.1} parent=1 // pred_check_branch
      %1566 = sbr.rel (0) target = $region53
    $region52: #{mobilenet_forward.1} parent=1 // pred_region
      %1567 = dma.done [#allocation4], 32
    $region53: #{mobilenet_forward.1} parent=1 // pred_fallthru
      _
    // Predicated region
    $region54: #{mobilenet_forward.1} parent=1 // pred_check
      _
    $region55: #{mobilenet_forward.1} parent=1 // pred_check_branch
      %1569 = sbr.rel (0) target = $region57
    $region56: #{mobilenet_forward.1} parent=1 // pred_region
      %1570 = dma.done [#allocation6], 32
    $region57: #{mobilenet_forward.1} parent=1 // pred_fallthru
      _
    // Predicated region
    $region58: #{mobilenet_forward.1} parent=1 // pred_check
      _
    $region59: #{mobilenet_forward.1} parent=1 // pred_check_branch
      %1572 = sbr.rel (0) target = $region61
    $region60: #{mobilenet_forward.1} parent=1 // pred_region
      %1573 = dma.done [#allocation6], 32
    $region61: #{mobilenet_forward.1} parent=1 // pred_fallthru
      _
    %1574 = vsyncpa [#allocation4], 1
    %1575 = vsyncpa [#allocation6], 1

</llo_original>
